<compile_context>
chip_gen: v7x
topology: tpu7x:2x2x1
jax: 0.10.0
libtpu: 0.0.40
codegen_flags: <defaults>
</compile_context>

<pallas_src>
import numpy as np
import jax
import jax.numpy as jnp
from jax import lax
from jax.experimental import pallas as pl
from jax.experimental.pallas import tpu as pltpu

# ----------------------------- configuration ------------------------------
B, T = 2, 8
N_EMBD = 64            # C == n_embd
DIM_ATT = 64           # dim_att
DIM_FFN = 128          # dim_ffn
HEAD_SIZE = 16         # head_size_a (RWKV_HEAD_SIZE_A)
N_HEAD = DIM_ATT // HEAD_SIZE
N_LAYER = 4
LAYER_ID = 1           # != 0  ->  att + ffn path, no ln0
HEAD_SIZE_DIVISOR = 8.0
LN_EPS = 1e-5
GN_EPS = 1e-5


# ----------------------------- fused Pallas kernel ------------------------
def _ln_rows(x, w, b, eps):
    mu = jnp.mean(x, axis=-1, keepdims=True)
    var = jnp.mean((x - mu) ** 2, axis=-1, keepdims=True)
    return (x - mu) * lax.rsqrt(var + eps) * w + b


def _block_kernel(x_ref, ln1_ref, ln2_ref, lnx_ref, u_ref, wpr_ref, watt_ref,
                  wo_ref, wfkr_ref, wfv_ref, shiftm_ref, amask_ref, erep_ref,
                  km_ref, vm_ref, mavg_ref, o_ref):
    C, D, F = N_EMBD, DIM_ATT, DIM_FFN

    x = x_ref[...]                                  # (BT, C)
    shiftm = shiftm_ref[...]                        # (BT, BT) block-diag shift

    # ---------------- x = x + att(ln1(x)) ----------------
    ln1 = ln1_ref[...]
    xln = _ln_rows(x, ln1[0:1, :], ln1[1:2, :], LN_EPS)
    xx = jnp.dot(shiftm, xln, preferred_element_type=jnp.float32)   # time_shift

    watt = watt_ref[...]                            # (2C, 4D) fused r|k|v|g proj
    rkvg = (jnp.dot(xln, watt[:C, :], preferred_element_type=jnp.float32)
            + jnp.dot(xx, watt[C:, :], preferred_element_type=jnp.float32))
    r = rkvg[:, 0 * D:1 * D]
    k = rkvg[:, 1 * D:2 * D]
    v = rkvg[:, 2 * D:3 * D]
    gz = rkvg[:, 3 * D:4 * D]
    g = gz * jax.nn.sigmoid(gz)                     # SiLU gate

    # ----- WKV5: strictly-causal decayed part, all heads in two matmuls -----
    rq = r * wpr_ref[...]                           # (BT, D)   r * w^t
    erep = erep_ref[...]                            # (H*BT, BT) stacked identity
    kb = jnp.dot(erep, k, preferred_element_type=jnp.float32)   # replicate k per head
    vb = jnp.dot(erep, v, preferred_element_type=jnp.float32)   # replicate v per head
    kqb = kb * km_ref[...]                          # mask to own head, * w^-(s+1)
    vst = vb * vm_ref[...]                          # mask to own head
    a = lax.dot_general(rq, kqb, (((1,), (1,)), ((), ())),
                        preferred_element_type=jnp.float32)      # (BT, H*BT)
    a = a * amask_ref[...]                          # causal & same-sequence mask
    y = jnp.dot(a, vst, preferred_element_type=jnp.float32)      # (BT, D)

    # ----- "u" bonus (diagonal) term: per-head sum broadcast via mavg -----
    mavg = mavg_ref[...]                            # (D, D) block-diag, 1/N entries
    # u_ref is pre-scaled by N so the block-average matmul yields the block-sum.
    bonus = jnp.dot(r * u_ref[...] * k, mavg, preferred_element_type=jnp.float32)
    y = y + bonus * v

    # ----- GroupNorm(n_head, dim_att) on y / head_size_divisor, all heads -----
    yd = y * (1.0 / HEAD_SIZE_DIVISOR)
    mu = jnp.dot(yd, mavg, preferred_element_type=jnp.float32)
    d = yd - mu
    var = jnp.dot(d * d, mavg, preferred_element_type=jnp.float32)
    lnx = lnx_ref[...]
    yn = d * lax.rsqrt(var + GN_EPS) * lnx[0:1, :] + lnx[1:2, :]

    att = jnp.dot(yn * g, wo_ref[...], preferred_element_type=jnp.float32)
    x = x + att

    # ---------------- x = x + ffn(ln2(x)) ----------------
    ln2 = ln2_ref[...]
    xln2 = _ln_rows(x, ln2[0:1, :], ln2[1:2, :], LN_EPS)
    xx2 = jnp.dot(shiftm, xln2, preferred_element_type=jnp.float32)

    wfkr = wfkr_ref[...]                            # (2C, F + C) fused ffn k|r proj
    kr = (jnp.dot(xln2, wfkr[:C, :], preferred_element_type=jnp.float32)
          + jnp.dot(xx2, wfkr[C:, :], preferred_element_type=jnp.float32))
    kk = jnp.maximum(kr[:, :F], 0.0)
    kk = kk * kk
    rr = jax.nn.sigmoid(kr[:, F:])
    kv = jnp.dot(kk, wfv_ref[...], preferred_element_type=jnp.float32)

    o_ref[...] = (x + rr * kv).astype(o_ref.dtype)


def block_forward_pallas(x, p):
    Bq, Tq, C = x.shape
    H, N, D, F = N_HEAD, HEAD_SIZE, DIM_ATT, DIM_FFN
    BT = Bq * Tq
    f32 = jnp.float32

    # ---- parameter-only prep (would be cached at model-load time) ----
    ln1 = jnp.stack([p["ln1_w"], p["ln1_b"]])                  # (2, C)
    ln2 = jnp.stack([p["ln2_w"], p["ln2_b"]])                  # (2, C)
    lnx = jnp.stack([p["lnx_w"], p["lnx_b"]])                  # (2, D)
    # u pre-scaled by N: the in-kernel block-average matmul then gives block-sum.
    u_row = p["att_time_faaaa"].reshape(1, D) * float(N)       # (1, D)

    logw = -jnp.exp(p["att_time_decay"]).reshape(1, D)         # log(w) < 0
    t_pos = jnp.tile(jnp.arange(Tq, dtype=f32), Bq)[:, None]   # (BT, 1) pos in seq
    wpr = jnp.exp(logw * t_pos)                                # (BT, D)  w^t
    wpk_rows = jnp.exp(-logw * (t_pos + 1.0))                  # (BT, D)  w^-(s+1)

    hm = (jnp.arange(D)[None, :] // N == jnp.arange(H)[:, None]).astype(f32)  # (H, D)
    km = (hm[:, None, :] * wpk_rows[None, :, :]).reshape(H * BT, D)
    vm = jnp.broadcast_to(hm[:, None, :], (H, BT, D)).reshape(H * BT, D)
    erep = jnp.tile(jnp.eye(BT, dtype=f32), (H, 1))            # (H*BT, BT)
    mavg = (hm.T @ hm) / float(N)                              # (D, D) block-diag 1/N

    bt = jnp.arange(BT)
    same_seq = (bt[:, None] // Tq) == (bt[None, :] // Tq)
    shiftm = jnp.where(same_seq & (bt[None, :] + 1 == bt[:, None]),
                       1.0, 0.0).astype(f32)                   # (BT, BT)

    col = jnp.arange(H * BT)
    col_bs = col % BT
    same_seq_c = (bt[:, None] // Tq) == (col_bs[None, :] // Tq)
    causal = (col_bs[None, :] % Tq) < (bt[:, None] % Tq)
    amask = jnp.where(same_seq_c & causal, 1.0, 0.0).astype(f32)  # (BT, H*BT)

    def fold(mix, W):
        # x*mix + shift(x)*(1-mix) projected by W == [x | shift(x)] @ fold(mix, W)
        return jnp.concatenate([mix[:, None] * W, (1.0 - mix)[:, None] * W], axis=0)

    watt = jnp.concatenate(
        [fold(p["att_time_mix_r"], p["att_Wr"]),
         fold(p["att_time_mix_k"], p["att_Wk"]),
         fold(p["att_time_mix_v"], p["att_Wv"]),
         fold(p["att_time_mix_g"], p["att_Wg"])], axis=1)      # (2C, 4D)
    wfkr = jnp.concatenate(
        [fold(p["ffn_time_mix_k"], p["ffn_Wk"]),
         fold(p["ffn_time_mix_r"], p["ffn_Wr"])], axis=1)      # (2C, F + C)

    xf = x.reshape(BT, C)
    vmem = pl.BlockSpec(memory_space=pltpu.MemorySpace.VMEM)
    out = pl.pallas_call(
        _block_kernel,
        out_shape=jax.ShapeDtypeStruct((BT, C), jnp.float32),
        in_specs=[vmem] * 16,
        out_specs=vmem,
    )(xf, ln1, ln2, lnx, u_row, wpr, watt, p["att_Wo"], wfkr, p["ffn_Wv"],
      shiftm, amask, erep, km, vm, mavg)
    return out.reshape(Bq, Tq, C)


# ----------------------------- parameters ---------------------------------
def make_params(key):
    C, H, N = N_EMBD, N_HEAD, HEAD_SIZE
    ratio_0_to_1 = LAYER_ID / (N_LAYER - 1)
    ratio_1_to_almost0 = 1.0 - LAYER_ID / N_LAYER
    ddd = np.arange(C, dtype=np.float64) / C

    p = {}
    p["att_time_mix_k"] = jnp.asarray(ddd ** ratio_1_to_almost0, jnp.float32)
    p["att_time_mix_v"] = jnp.asarray(ddd ** ratio_1_to_almost0 + 0.3 * ratio_0_to_1, jnp.float32)
    p["att_time_mix_r"] = jnp.asarray(ddd ** (0.5 * ratio_1_to_almost0), jnp.float32)
    p["att_time_mix_g"] = jnp.asarray(ddd ** (0.5 * ratio_1_to_almost0), jnp.float32)
    n = np.arange(DIM_ATT, dtype=np.float64)
    decay = -6.0 + 5.0 * (n / (DIM_ATT - 1)) ** (0.7 + 1.3 * ratio_0_to_1)
    p["att_time_decay"] = jnp.asarray(decay.reshape(H, N), jnp.float32)
    zig = ((n + 1) % 3 - 1) * 0.1
    faaaa = ratio_0_to_1 * (1.0 - n / (DIM_ATT - 1)) + zig
    p["att_time_faaaa"] = jnp.asarray(faaaa.reshape(H, N), jnp.float32)
    p["ffn_time_mix_k"] = jnp.asarray(ddd ** ratio_1_to_almost0, jnp.float32)
    p["ffn_time_mix_r"] = jnp.asarray(ddd ** ratio_1_to_almost0, jnp.float32)

    ks = jax.random.split(key, 11)

    def lin(k_, fan_in, fan_out, scale=0.1):
        return jax.random.normal(k_, (fan_in, fan_out), jnp.float32) * scale

    p["att_Wr"] = lin(ks[0], C, DIM_ATT)
    p["att_Wk"] = lin(ks[1], C, DIM_ATT)
    p["att_Wv"] = lin(ks[2], C, DIM_ATT)
    p["att_Wg"] = lin(ks[3], C, DIM_ATT)
    p["att_Wo"] = lin(ks[4], DIM_ATT, C)
    p["ffn_Wk"] = lin(ks[5], C, DIM_FFN)
    p["ffn_Wr"] = lin(ks[6], C, C)
    p["ffn_Wv"] = lin(ks[7], DIM_FFN, C)

    def ln_params(k_, dim):
        k1, k2 = jax.random.split(k_)
        return (1.0 + 0.1 * jax.random.normal(k1, (dim,), jnp.float32),
                0.1 * jax.random.normal(k2, (dim,), jnp.float32))

    p["ln1_w"], p["ln1_b"] = ln_params(ks[8], C)
    p["ln2_w"], p["ln2_b"] = ln_params(ks[9], C)
    p["lnx_w"], p["lnx_b"] = ln_params(ks[10], DIM_ATT)
    return p


# ----------------------------- pure-JAX reference -------------------------
def time_shift(x):  # nn.ZeroPad2d((0,0,1,-1)) on (B, T, C)
    return jnp.concatenate([jnp.zeros_like(x[:, :1]), x[:, :-1]], axis=1)


def _ln_ref(x, w, b):
    mu = jnp.mean(x, -1, keepdims=True)
    var = jnp.mean((x - mu) ** 2, -1, keepdims=True)
    return (x - mu) / jnp.sqrt(var + LN_EPS) * w + b


def _gn_ref(x2d, w, b, groups):
    M, C = x2d.shape
    xg = x2d.reshape(M, groups, C // groups)
    mu = jnp.mean(xg, -1, keepdims=True)
    var = jnp.mean((xg - mu) ** 2, -1, keepdims=True)
    return ((xg - mu) / jnp.sqrt(var + GN_EPS)).reshape(M, C) * w + b


def _wkv5_ref(r, k, v, eew, u):
    Bq, H, Tq, N = r.shape
    state = jnp.zeros((Bq, H, N, N), jnp.float32)
    ys = []
    for t in range(Tq):
        rt, kt, vt = r[:, :, t], k[:, :, t], v[:, :, t]
        s = jnp.sum(rt * u[None] * kt, -1, keepdims=True)
        ys.append(vt * s + jnp.einsum("bhj,bhjn->bhn", rt, state))
        state = state * eew[None, :, :, None] + kt[..., :, None] * vt[..., None, :]
    return jnp.stack(ys, axis=2)


def block_forward_ref(x, p):
    Bq, Tq, C = x.shape
    H, N = N_HEAD, HEAD_SIZE
    xln = _ln_ref(x, p["ln1_w"], p["ln1_b"])
    xx = time_shift(xln)
    mix = lambda m: xln * m + xx * (1.0 - m)
    r = mix(p["att_time_mix_r"]) @ p["att_Wr"]
    k = mix(p["att_time_mix_k"]) @ p["att_Wk"]
    v = mix(p["att_time_mix_v"]) @ p["att_Wv"]
    gz = mix(p["att_time_mix_g"]) @ p["att_Wg"]
    g = gz * jax.nn.sigmoid(gz)
    to_bhtn = lambda a: a.reshape(Bq, Tq, H, N).transpose(0, 2, 1, 3)
    eew = jnp.exp(-jnp.exp(p["att_time_decay"]))
    y = _wkv5_ref(to_bhtn(r), to_bhtn(k), to_bhtn(v), eew, p["att_time_faaaa"])
    y = y.transpose(0, 2, 1, 3).reshape(Bq * Tq, C)
    gx = _gn_ref(y / HEAD_SIZE_DIVISOR, p["lnx_w"], p["lnx_b"], H).reshape(Bq, Tq, C)
    x = x + (gx * g.reshape(Bq, Tq, C)) @ p["att_Wo"]
    xln2 = _ln_ref(x, p["ln2_w"], p["ln2_b"])
    xx2 = time_shift(xln2)
    fxk = xln2 * p["ffn_time_mix_k"] + xx2 * (1.0 - p["ffn_time_mix_k"])
    fxr = xln2 * p["ffn_time_mix_r"] + xx2 * (1.0 - p["ffn_time_mix_r"])
    kk = jnp.maximum(fxk @ p["ffn_Wk"], 0.0) ** 2
    kv = kk @ p["ffn_Wv"]
    return x + jax.nn.sigmoid(fxr @ p["ffn_Wr"]) * kv


# --------------------------------- main ------------------------------------
if __name__ == "__main__":
    key = jax.random.PRNGKey(0)
    kx, kp = jax.random.split(key)
    params = make_params(kp)
    x = jax.random.normal(kx, (B, T, N_EMBD), jnp.float32)

    out = jax.jit(block_forward_pallas)(x, params)
    out = jax.block_until_ready(out)

    ref = jax.block_until_ready(block_forward_ref(x, params))
    np.testing.assert_allclose(np.asarray(out), np.asarray(ref), rtol=2e-3, atol=2e-3)

    print("KERNEL_OK")
</pallas_src>

<mosaic_0001>
module attributes {stable_mosaic.version = 11 : i64} {
  func.func @_block_kernel(%arg0: memref<16x64xf32, #tpu.memory_space<vmem>>, %arg1: memref<2x64xf32, #tpu.memory_space<vmem>>, %arg2: memref<2x64xf32, #tpu.memory_space<vmem>>, %arg3: memref<2x64xf32, #tpu.memory_space<vmem>>, %arg4: memref<1x64xf32, #tpu.memory_space<vmem>>, %arg5: memref<16x64xf32, #tpu.memory_space<vmem>>, %arg6: memref<128x256xf32, #tpu.memory_space<vmem>>, %arg7: memref<64x64xf32, #tpu.memory_space<vmem>>, %arg8: memref<128x192xf32, #tpu.memory_space<vmem>>, %arg9: memref<128x64xf32, #tpu.memory_space<vmem>>, %arg10: memref<16x16xf32, #tpu.memory_space<vmem>>, %arg11: memref<16x64xf32, #tpu.memory_space<vmem>>, %arg12: memref<64x16xf32, #tpu.memory_space<vmem>>, %arg13: memref<64x64xf32, #tpu.memory_space<vmem>>, %arg14: memref<64x64xf32, #tpu.memory_space<vmem>>, %arg15: memref<64x64xf32, #tpu.memory_space<vmem>>, %arg16: memref<16x64xf32, #tpu.memory_space<vmem>>) attributes {dimension_semantics = [], scalar_prefetch = 0 : i64, scratch_operands = 0 : i64, tpu.core_type = #tpu.core_type<tc>} {
    %c0 = arith.constant 0 : index
    %c0_0 = arith.constant 0 : index
    %0 = vector.load %arg0[%c0, %c0_0] : memref<16x64xf32, #tpu.memory_space<vmem>>, vector<16x64xf32>
    %c0_1 = arith.constant 0 : index
    %c0_2 = arith.constant 0 : index
    %1 = vector.load %arg10[%c0_1, %c0_2] : memref<16x16xf32, #tpu.memory_space<vmem>>, vector<16x16xf32>
    %c0_3 = arith.constant 0 : index
    %c0_4 = arith.constant 0 : index
    %2 = vector.load %arg1[%c0_3, %c0_4] : memref<2x64xf32, #tpu.memory_space<vmem>>, vector<2x64xf32>
    %3 = vector.extract_strided_slice %2 {offsets = [0, 0], sizes = [1, 64], strides = [1, 1]} : vector<2x64xf32> to vector<1x64xf32>
    %4 = vector.extract_strided_slice %2 {offsets = [1, 0], sizes = [1, 64], strides = [1, 1]} : vector<2x64xf32> to vector<1x64xf32>
    %cst = arith.constant dense<0.000000e+00> : vector<16xf32>
    %5 = vector.multi_reduction <add>, %0, %cst [1] : vector<16x64xf32> to vector<16xf32>
    %6 = vector.shape_cast %5 : vector<16xf32> to vector<16x1xf32>
    %cst_5 = arith.constant 6.400000e+01 : f32
    %7 = vector.broadcast %cst_5 : f32 to vector<16x1xf32>
    %8 = arith.divf %6, %7 : vector<16x1xf32>
    %9 = vector.broadcast %8 : vector<16x1xf32> to vector<16x64xf32>
    %10 = arith.subf %0, %9 : vector<16x64xf32>
    %11 = arith.mulf %10, %10 : vector<16x64xf32>
    %cst_6 = arith.constant dense<0.000000e+00> : vector<16xf32>
    %12 = vector.multi_reduction <add>, %11, %cst_6 [1] : vector<16x64xf32> to vector<16xf32>
    %13 = vector.shape_cast %12 : vector<16xf32> to vector<16x1xf32>
    %cst_7 = arith.constant 6.400000e+01 : f32
    %14 = vector.broadcast %cst_7 : f32 to vector<16x1xf32>
    %15 = arith.divf %13, %14 : vector<16x1xf32>
    %16 = vector.broadcast %8 : vector<16x1xf32> to vector<16x64xf32>
    %17 = arith.subf %0, %16 : vector<16x64xf32>
    %cst_8 = arith.constant 9.99999974E-6 : f32
    %18 = vector.broadcast %cst_8 : f32 to vector<16x1xf32>
    %19 = arith.addf %15, %18 : vector<16x1xf32>
    %20 = math.rsqrt %19 : vector<16x1xf32>
    %21 = vector.broadcast %20 : vector<16x1xf32> to vector<16x64xf32>
    %22 = arith.mulf %17, %21 : vector<16x64xf32>
    %23 = vector.broadcast %3 : vector<1x64xf32> to vector<16x64xf32>
    %24 = arith.mulf %22, %23 : vector<16x64xf32>
    %25 = vector.broadcast %4 : vector<1x64xf32> to vector<16x64xf32>
    %26 = arith.addf %24, %25 : vector<16x64xf32>
    %cst_9 = arith.constant dense<0.000000e+00> : vector<16x64xf32>
    %27 = tpu.matmul %1, %26, %cst_9 {dimension_numbers = #tpu.dot_dimension_numbers<[1], [0], [0], [1], [0, 0, 1, 1], [], []>} : vector<16x16xf32>, vector<16x64xf32>, vector<16x64xf32> -> vector<16x64xf32>
    %c0_10 = arith.constant 0 : index
    %c0_11 = arith.constant 0 : index
    %28 = vector.load %arg6[%c0_10, %c0_11] : memref<128x256xf32, #tpu.memory_space<vmem>>, vector<128x256xf32>
    %29 = vector.extract_strided_slice %28 {offsets = [0, 0], sizes = [64, 256], strides = [1, 1]} : vector<128x256xf32> to vector<64x256xf32>
    %cst_12 = arith.constant dense<0.000000e+00> : vector<16x256xf32>
    %30 = tpu.matmul %26, %29, %cst_12 {dimension_numbers = #tpu.dot_dimension_numbers<[1], [0], [0], [1], [0, 0, 1, 1], [], []>} : vector<16x64xf32>, vector<64x256xf32>, vector<16x256xf32> -> vector<16x256xf32>
    %31 = vector.extract_strided_slice %28 {offsets = [64, 0], sizes = [64, 256], strides = [1, 1]} : vector<128x256xf32> to vector<64x256xf32>
    %cst_13 = arith.constant dense<0.000000e+00> : vector<16x256xf32>
    %32 = tpu.matmul %27, %31, %cst_13 {dimension_numbers = #tpu.dot_dimension_numbers<[1], [0], [0], [1], [0, 0, 1, 1], [], []>} : vector<16x64xf32>, vector<64x256xf32>, vector<16x256xf32> -> vector<16x256xf32>
    %33 = arith.addf %30, %32 : vector<16x256xf32>
    %34 = vector.extract_strided_slice %33 {offsets = [0, 0], sizes = [16, 64], strides = [1, 1]} : vector<16x256xf32> to vector<16x64xf32>
    %35 = vector.extract_strided_slice %33 {offsets = [0, 64], sizes = [16, 64], strides = [1, 1]} : vector<16x256xf32> to vector<16x64xf32>
    %36 = vector.extract_strided_slice %33 {offsets = [0, 128], sizes = [16, 64], strides = [1, 1]} : vector<16x256xf32> to vector<16x64xf32>
    %37 = vector.extract_strided_slice %33 {offsets = [0, 192], sizes = [16, 64], strides = [1, 1]} : vector<16x256xf32> to vector<16x64xf32>
    %38 = arith.negf %37 : vector<16x64xf32>
    %39 = math.exp %38 : vector<16x64xf32>
    %cst_14 = arith.constant 1.000000e+00 : f32
    %40 = vector.broadcast %cst_14 : f32 to vector<16x64xf32>
    %41 = arith.addf %40, %39 : vector<16x64xf32>
    %42 = arith.divf %40, %41 : vector<16x64xf32>
    %43 = arith.mulf %37, %42 : vector<16x64xf32>
    %c0_15 = arith.constant 0 : index
    %c0_16 = arith.constant 0 : index
    %44 = vector.load %arg5[%c0_15, %c0_16] : memref<16x64xf32, #tpu.memory_space<vmem>>, vector<16x64xf32>
    %45 = arith.mulf %34, %44 : vector<16x64xf32>
    %c0_17 = arith.constant 0 : index
    %c0_18 = arith.constant 0 : index
    %46 = vector.load %arg12[%c0_17, %c0_18] : memref<64x16xf32, #tpu.memory_space<vmem>>, vector<64x16xf32>
    %cst_19 = arith.constant dense<0.000000e+00> : vector<64x64xf32>
    %47 = tpu.matmul %46, %35, %cst_19 {dimension_numbers = #tpu.dot_dimension_numbers<[1], [0], [0], [1], [0, 0, 1, 1], [], []>} : vector<64x16xf32>, vector<16x64xf32>, vector<64x64xf32> -> vector<64x64xf32>
    %cst_20 = arith.constant dense<0.000000e+00> : vector<64x64xf32>
    %48 = tpu.matmul %46, %36, %cst_20 {dimension_numbers = #tpu.dot_dimension_numbers<[1], [0], [0], [1], [0, 0, 1, 1], [], []>} : vector<64x16xf32>, vector<16x64xf32>, vector<64x64xf32> -> vector<64x64xf32>
    %c0_21 = arith.constant 0 : index
    %c0_22 = arith.constant 0 : index
    %49 = vector.load %arg13[%c0_21, %c0_22] : memref<64x64xf32, #tpu.memory_space<vmem>>, vector<64x64xf32>
    %50 = arith.mulf %47, %49 : vector<64x64xf32>
    %c0_23 = arith.constant 0 : index
    %c0_24 = arith.constant 0 : index
    %51 = vector.load %arg14[%c0_23, %c0_24] : memref<64x64xf32, #tpu.memory_space<vmem>>, vector<64x64xf32>
    %52 = arith.mulf %48, %51 : vector<64x64xf32>
    %cst_25 = arith.constant dense<0.000000e+00> : vector<16x64xf32>
    %53 = tpu.matmul %45, %50, %cst_25 {dimension_numbers = #tpu.dot_dimension_numbers<[1], [1], [0], [0], [0, 0, 1, 0], [], []>} : vector<16x64xf32>, vector<64x64xf32>, vector<16x64xf32> -> vector<16x64xf32>
    %c0_26 = arith.constant 0 : index
    %c0_27 = arith.constant 0 : index
    %54 = vector.load %arg11[%c0_26, %c0_27] : memref<16x64xf32, #tpu.memory_space<vmem>>, vector<16x64xf32>
    %55 = arith.mulf %53, %54 : vector<16x64xf32>
    %cst_28 = arith.constant dense<0.000000e+00> : vector<16x64xf32>
    %56 = tpu.matmul %55, %52, %cst_28 {dimension_numbers = #tpu.dot_dimension_numbers<[1], [0], [0], [1], [0, 0, 1, 1], [], []>} : vector<16x64xf32>, vector<64x64xf32>, vector<16x64xf32> -> vector<16x64xf32>
    %c0_29 = arith.constant 0 : index
    %c0_30 = arith.constant 0 : index
    %57 = vector.load %arg15[%c0_29, %c0_30] : memref<64x64xf32, #tpu.memory_space<vmem>>, vector<64x64xf32>
    %c0_31 = arith.constant 0 : index
    %c0_32 = arith.constant 0 : index
    %58 = vector.load %arg4[%c0_31, %c0_32] : memref<1x64xf32, #tpu.memory_space<vmem>>, vector<1x64xf32>
    %59 = vector.broadcast %58 : vector<1x64xf32> to vector<16x64xf32>
    %60 = arith.mulf %34, %59 : vector<16x64xf32>
    %61 = arith.mulf %60, %35 : vector<16x64xf32>
    %cst_33 = arith.constant dense<0.000000e+00> : vector<16x64xf32>
    %62 = tpu.matmul %61, %57, %cst_33 {dimension_numbers = #tpu.dot_dimension_numbers<[1], [0], [0], [1], [0, 0, 1, 1], [], []>} : vector<16x64xf32>, vector<64x64xf32>, vector<16x64xf32> -> vector<16x64xf32>
    %63 = arith.mulf %62, %36 : vector<16x64xf32>
    %64 = arith.addf %56, %63 : vector<16x64xf32>
    %cst_34 = arith.constant 1.250000e-01 : f32
    %65 = vector.broadcast %cst_34 : f32 to vector<16x64xf32>
    %66 = arith.mulf %64, %65 : vector<16x64xf32>
    %cst_35 = arith.constant dense<0.000000e+00> : vector<16x64xf32>
    %67 = tpu.matmul %66, %57, %cst_35 {dimension_numbers = #tpu.dot_dimension_numbers<[1], [0], [0], [1], [0, 0, 1, 1], [], []>} : vector<16x64xf32>, vector<64x64xf32>, vector<16x64xf32> -> vector<16x64xf32>
    %68 = arith.subf %66, %67 : vector<16x64xf32>
    %69 = arith.mulf %68, %68 : vector<16x64xf32>
    %cst_36 = arith.constant dense<0.000000e+00> : vector<16x64xf32>
    %70 = tpu.matmul %69, %57, %cst_36 {dimension_numbers = #tpu.dot_dimension_numbers<[1], [0], [0], [1], [0, 0, 1, 1], [], []>} : vector<16x64xf32>, vector<64x64xf32>, vector<16x64xf32> -> vector<16x64xf32>
    %c0_37 = arith.constant 0 : index
    %c0_38 = arith.constant 0 : index
    %71 = vector.load %arg3[%c0_37, %c0_38] : memref<2x64xf32, #tpu.memory_space<vmem>>, vector<2x64xf32>
    %cst_39 = arith.constant 9.99999974E-6 : f32
    %72 = vector.broadcast %cst_39 : f32 to vector<16x64xf32>
    %73 = arith.addf %70, %72 : vector<16x64xf32>
    %74 = math.rsqrt %73 : vector<16x64xf32>
    %75 = arith.mulf %68, %74 : vector<16x64xf32>
    %76 = vector.extract_strided_slice %71 {offsets = [0, 0], sizes = [1, 64], strides = [1, 1]} : vector<2x64xf32> to vector<1x64xf32>
    %77 = vector.broadcast %76 : vector<1x64xf32> to vector<16x64xf32>
    %78 = arith.mulf %75, %77 : vector<16x64xf32>
    %79 = vector.extract_strided_slice %71 {offsets = [1, 0], sizes = [1, 64], strides = [1, 1]} : vector<2x64xf32> to vector<1x64xf32>
    %80 = vector.broadcast %79 : vector<1x64xf32> to vector<16x64xf32>
    %81 = arith.addf %78, %80 : vector<16x64xf32>
    %82 = arith.mulf %81, %43 : vector<16x64xf32>
    %c0_40 = arith.constant 0 : index
    %c0_41 = arith.constant 0 : index
    %83 = vector.load %arg7[%c0_40, %c0_41] : memref<64x64xf32, #tpu.memory_space<vmem>>, vector<64x64xf32>
    %cst_42 = arith.constant dense<0.000000e+00> : vector<16x64xf32>
    %84 = tpu.matmul %82, %83, %cst_42 {dimension_numbers = #tpu.dot_dimension_numbers<[1], [0], [0], [1], [0, 0, 1, 1], [], []>} : vector<16x64xf32>, vector<64x64xf32>, vector<16x64xf32> -> vector<16x64xf32>
    %85 = arith.addf %0, %84 : vector<16x64xf32>
    %c0_43 = arith.constant 0 : index
    %c0_44 = arith.constant 0 : index
    %86 = vector.load %arg2[%c0_43, %c0_44] : memref<2x64xf32, #tpu.memory_space<vmem>>, vector<2x64xf32>
    %87 = vector.extract_strided_slice %86 {offsets = [0, 0], sizes = [1, 64], strides = [1, 1]} : vector<2x64xf32> to vector<1x64xf32>
    %88 = vector.extract_strided_slice %86 {offsets = [1, 0], sizes = [1, 64], strides = [1, 1]} : vector<2x64xf32> to vector<1x64xf32>
    %cst_45 = arith.constant dense<0.000000e+00> : vector<16xf32>
    %89 = vector.multi_reduction <add>, %85, %cst_45 [1] : vector<16x64xf32> to vector<16xf32>
    %90 = vector.shape_cast %89 : vector<16xf32> to vector<16x1xf32>
    %cst_46 = arith.constant 6.400000e+01 : f32
    %91 = vector.broadcast %cst_46 : f32 to vector<16x1xf32>
    %92 = arith.divf %90, %91 : vector<16x1xf32>
    %93 = vector.broadcast %92 : vector<16x1xf32> to vector<16x64xf32>
    %94 = arith.subf %85, %93 : vector<16x64xf32>
    %95 = arith.mulf %94, %94 : vector<16x64xf32>
    %cst_47 = arith.constant dense<0.000000e+00> : vector<16xf32>
    %96 = vector.multi_reduction <add>, %95, %cst_47 [1] : vector<16x64xf32> to vector<16xf32>
    %97 = vector.shape_cast %96 : vector<16xf32> to vector<16x1xf32>
    %cst_48 = arith.constant 6.400000e+01 : f32
    %98 = vector.broadcast %cst_48 : f32 to vector<16x1xf32>
    %99 = arith.divf %97, %98 : vector<16x1xf32>
    %100 = vector.broadcast %92 : vector<16x1xf32> to vector<16x64xf32>
    %101 = arith.subf %85, %100 : vector<16x64xf32>
    %cst_49 = arith.constant 9.99999974E-6 : f32
    %102 = vector.broadcast %cst_49 : f32 to vector<16x1xf32>
    %103 = arith.addf %99, %102 : vector<16x1xf32>
    %104 = math.rsqrt %103 : vector<16x1xf32>
    %105 = vector.broadcast %104 : vector<16x1xf32> to vector<16x64xf32>
    %106 = arith.mulf %101, %105 : vector<16x64xf32>
    %107 = vector.broadcast %87 : vector<1x64xf32> to vector<16x64xf32>
    %108 = arith.mulf %106, %107 : vector<16x64xf32>
    %109 = vector.broadcast %88 : vector<1x64xf32> to vector<16x64xf32>
    %110 = arith.addf %108, %109 : vector<16x64xf32>
    %cst_50 = arith.constant dense<0.000000e+00> : vector<16x64xf32>
    %111 = tpu.matmul %1, %110, %cst_50 {dimension_numbers = #tpu.dot_dimension_numbers<[1], [0], [0], [1], [0, 0, 1, 1], [], []>} : vector<16x16xf32>, vector<16x64xf32>, vector<16x64xf32> -> vector<16x64xf32>
    %c0_51 = arith.constant 0 : index
    %c0_52 = arith.constant 0 : index
    %112 = vector.load %arg8[%c0_51, %c0_52] : memref<128x192xf32, #tpu.memory_space<vmem>>, vector<128x192xf32>
    %113 = vector.extract_strided_slice %112 {offsets = [0, 0], sizes = [64, 192], strides = [1, 1]} : vector<128x192xf32> to vector<64x192xf32>
    %cst_53 = arith.constant dense<0.000000e+00> : vector<16x192xf32>
    %114 = tpu.matmul %110, %113, %cst_53 {dimension_numbers = #tpu.dot_dimension_numbers<[1], [0], [0], [1], [0, 0, 1, 1], [], []>} : vector<16x64xf32>, vector<64x192xf32>, vector<16x192xf32> -> vector<16x192xf32>
    %115 = vector.extract_strided_slice %112 {offsets = [64, 0], sizes = [64, 192], strides = [1, 1]} : vector<128x192xf32> to vector<64x192xf32>
    %cst_54 = arith.constant dense<0.000000e+00> : vector<16x192xf32>
    %116 = tpu.matmul %111, %115, %cst_54 {dimension_numbers = #tpu.dot_dimension_numbers<[1], [0], [0], [1], [0, 0, 1, 1], [], []>} : vector<16x64xf32>, vector<64x192xf32>, vector<16x192xf32> -> vector<16x192xf32>
    %117 = arith.addf %114, %116 : vector<16x192xf32>
    %118 = vector.extract_strided_slice %117 {offsets = [0, 0], sizes = [16, 128], strides = [1, 1]} : vector<16x192xf32> to vector<16x128xf32>
    %cst_55 = arith.constant 0.000000e+00 : f32
    %119 = vector.broadcast %cst_55 : f32 to vector<16x128xf32>
    %120 = arith.maximumf %118, %119 : vector<16x128xf32>
    %121 = arith.mulf %120, %120 : vector<16x128xf32>
    %122 = vector.extract_strided_slice %117 {offsets = [0, 128], sizes = [16, 64], strides = [1, 1]} : vector<16x192xf32> to vector<16x64xf32>
    %123 = arith.negf %122 : vector<16x64xf32>
    %124 = math.exp %123 : vector<16x64xf32>
    %cst_56 = arith.constant 1.000000e+00 : f32
    %125 = vector.broadcast %cst_56 : f32 to vector<16x64xf32>
    %126 = arith.addf %125, %124 : vector<16x64xf32>
    %127 = arith.divf %125, %126 : vector<16x64xf32>
    %c0_57 = arith.constant 0 : index
    %c0_58 = arith.constant 0 : index
    %128 = vector.load %arg9[%c0_57, %c0_58] : memref<128x64xf32, #tpu.memory_space<vmem>>, vector<128x64xf32>
    %cst_59 = arith.constant dense<0.000000e+00> : vector<16x64xf32>
    %129 = tpu.matmul %121, %128, %cst_59 {dimension_numbers = #tpu.dot_dimension_numbers<[1], [0], [0], [1], [0, 0, 1, 1], [], []>} : vector<16x128xf32>, vector<128x64xf32>, vector<16x64xf32> -> vector<16x64xf32>
    %130 = arith.mulf %127, %129 : vector<16x64xf32>
    %131 = arith.addf %85, %130 : vector<16x64xf32>
    %c0_60 = arith.constant 0 : index
    %c0_61 = arith.constant 0 : index
    %132 = vector.load %arg16[%c0_60, %c0_61] : memref<16x64xf32, #tpu.memory_space<vmem>>, vector<16x64xf32>
    tpu.vector_store %arg16[%c0_60, %c0_61], %131 {strides = array<i32>} : memref<16x64xf32, #tpu.memory_space<vmem>>, vector<16x64xf32>,
    return
  }
}

</mosaic_0001>

<llo_original>
// kernel: mul.77
$region0: #{mul.77}
  %s0 = inlined_call_operand.vmem [shape: f32[2,8], index: 0, kind: input, shape index: {}]
  %s1 = inlined_call_operand.vmem [shape: f32[16], index: 1, kind: output, shape index: {}]
  $region1: #{mul.77} parent=0
    #allocation0 [shape = 'u8[4096]{0}', space=vmem, size = 0x1000, scoped, tag = 'scoped mem for output reshape']
    #allocation1 [shape = 'u8[4096]{0}', space=vmem, size = 0x1000, scoped, tag = 'scoped mem for input reshape']
    %s3 = sshllo.u32 0, 2
    %v4 = vld [vmem:[%s0] sm:%s3]
    %5 = vst [vmem:[#allocation1] sm:%s3] %v4
    %v6 = vld [vmem:[#allocation1] sm:$0x1]
    %vm7 = vcmask 64512
    %8 = vst.msk [vmem:[#allocation0] sm:$0x1] %vm7, %v6
    %s9 = scalar_lea.vmem [#allocation1], 1
    %v10 = vld [vmem:[%s9] sm:$0x1]
    %11 = vrot.lane.b32.xlu0 %v10, 8
    %v12 = vpop.permute.xlu0 %11
    %vm13 = vcmask 130112
    %14 = vst.msk [vmem:[#allocation0] sm:$0x1] %vm13, %v12
    %s16 = sshllo.u32 0, 1
    %v18 = vld [vmem:[#allocation0] sm:%s16]
    %s19 = sshllo.u32 0, 1
    %20 = vst [vmem:[%s1] sm:%s19] %v18

// kernel: mul.3
$region0: #{mul.3}
  #allocation0 [shape = 's32[1]{0}', space=sflag, size = 0x4, scoped, tag = 'scoped memory for mul.3']
  %s0 = inlined_call_operand.vmem [shape: f32[64,64], index: 0, kind: input, shape index: {}]
  %s1 = inlined_call_operand.vmem [shape: f32[64,64], index: 1, kind: input, shape index: {}]
  %s2 = inlined_call_operand.vmem [shape: f32[64,64], index: 2, kind: output, shape index: {}]
  %v3 = vld [vmem:[%s0] sm:$0xff]
  %v4 = vld [vmem:[%s1] sm:$0xff]
  %5 = xla_tuple %v3, %v4
  %6 = xla_tuple %5
  %v7 = vmul.f32 %v3, %v4
  %8 = xla_tuple %v7
  %9 = vst [vmem:[%s2] sm:$0xff] %v7
  %s10 = scalar_lea.vmem %s0, 8
  %v11 = vld [vmem:[%s10] sm:$0xff]
  %s12 = scalar_lea.vmem %s1, 8
  %v13 = vld [vmem:[%s12] sm:$0xff]
  %14 = xla_tuple %v11, %v13
  %15 = xla_tuple %14
  %v16 = vmul.f32 %v11, %v13
  %17 = xla_tuple %v16
  %s18 = scalar_lea.vmem %s2, 8
  %19 = vst [vmem:[%s18] sm:$0xff] %v16
  %s20 = scalar_lea.vmem %s0, 16
  %v21 = vld [vmem:[%s20] sm:$0xff]
  %s22 = scalar_lea.vmem %s1, 16
  %v23 = vld [vmem:[%s22] sm:$0xff]
  %24 = xla_tuple %v21, %v23
  %25 = xla_tuple %24
  %v26 = vmul.f32 %v21, %v23
  %27 = xla_tuple %v26
  %s28 = scalar_lea.vmem %s2, 16
  %29 = vst [vmem:[%s28] sm:$0xff] %v26
  %s30 = scalar_lea.vmem %s0, 24
  %v31 = vld [vmem:[%s30] sm:$0xff]
  %s32 = scalar_lea.vmem %s1, 24
  %v33 = vld [vmem:[%s32] sm:$0xff]
  %34 = xla_tuple %v31, %v33
  %35 = xla_tuple %34
  %v36 = vmul.f32 %v31, %v33
  %37 = xla_tuple %v36
  %s38 = scalar_lea.vmem %s2, 24
  %39 = vst [vmem:[%s38] sm:$0xff] %v36
  %s40 = scalar_lea.vmem %s0, 32
  %v41 = vld [vmem:[%s40] sm:$0xff]
  %s42 = scalar_lea.vmem %s1, 32
  %v43 = vld [vmem:[%s42] sm:$0xff]
  %44 = xla_tuple %v41, %v43
  %45 = xla_tuple %44
  %v46 = vmul.f32 %v41, %v43
  %47 = xla_tuple %v46
  %s48 = scalar_lea.vmem %s2, 32
  %49 = vst [vmem:[%s48] sm:$0xff] %v46
  %s50 = scalar_lea.vmem %s0, 40
  %v51 = vld [vmem:[%s50] sm:$0xff]
  %s52 = scalar_lea.vmem %s1, 40
  %v53 = vld [vmem:[%s52] sm:$0xff]
  %54 = xla_tuple %v51, %v53
  %55 = xla_tuple %54
  %v56 = vmul.f32 %v51, %v53
  %57 = xla_tuple %v56
  %s58 = scalar_lea.vmem %s2, 40
  %59 = vst [vmem:[%s58] sm:$0xff] %v56
  %s60 = scalar_lea.vmem %s0, 48
  %v61 = vld [vmem:[%s60] sm:$0xff]
  %s62 = scalar_lea.vmem %s1, 48
  %v63 = vld [vmem:[%s62] sm:$0xff]
  %64 = xla_tuple %v61, %v63
  %65 = xla_tuple %64
  %v66 = vmul.f32 %v61, %v63
  %67 = xla_tuple %v66
  %s68 = scalar_lea.vmem %s2, 48
  %69 = vst [vmem:[%s68] sm:$0xff] %v66
  %s70 = scalar_lea.vmem %s0, 56
  %v71 = vld [vmem:[%s70] sm:$0xff]
  %s72 = scalar_lea.vmem %s1, 56
  %v73 = vld [vmem:[%s72] sm:$0xff]
  %74 = xla_tuple %v71, %v73
  %75 = xla_tuple %74
  %v76 = vmul.f32 %v71, %v73
  %77 = xla_tuple %v76
  %s78 = scalar_lea.vmem %s2, 56
  %79 = vst [vmem:[%s78] sm:$0xff] %v76

// kernel: neg.6
$region0: #{neg.6}
  #allocation0 [shape = 's32[1]{0}', space=sflag, size = 0x4, scoped, tag = 'scoped memory for neg.6']
  %s0 = inlined_call_operand.vmem [shape: f32[64], index: 0, kind: input, shape index: {}]
  %s1 = inlined_call_operand.vmem [shape: f32[64], index: 1, kind: output, shape index: {}]
  %v2 = vld [vmem:[%s0] sm:$0x1]
  %3 = xla_tuple %v2
  %4 = xla_tuple %3
  %v5 = vxor.u32 %v2, 2147483648
  %6 = xla_tuple %v5
  %7 = vst [vmem:[%s1] sm:$0x1] %v5

// kernel: block_forward_pallas.1
$region0: #{block_forward_pallas.1}
  #allocation0 [shape = 'u32[]', space=smem, size = 0x4, offset = 0x4, fixed_abs, tag = 'smem constant byte address 0x4 - core index']
  #allocation1 [shape = 'u32[144,128]{1,0:T(1,128)}', space=vmem, size = 0x12000, scoped, tag = 'internal scratch']
  %s0 = inlined_call_operand.vmem [shape: f32[16,64], index: 0, kind: input, shape index: {}]
  %s1 = inlined_call_operand.vmem [shape: f32[2,64], index: 1, kind: input, shape index: {}]
  %s2 = inlined_call_operand.vmem [shape: f32[2,64], index: 2, kind: input, shape index: {}]
  %s3 = inlined_call_operand.vmem [shape: f32[2,64], index: 3, kind: input, shape index: {}]
  %s4 = inlined_call_operand.vmem [shape: f32[1,64], index: 4, kind: input, shape index: {}]
  %s5 = inlined_call_operand.vmem [shape: f32[16,64], index: 5, kind: input, shape index: {}]
  %s6 = inlined_call_operand.vmem [shape: f32[128,256], index: 6, kind: input, shape index: {}]
  %s7 = inlined_call_operand.vmem [shape: f32[64,64], index: 7, kind: input, shape index: {}]
  %s8 = inlined_call_operand.vmem [shape: f32[128,192], index: 8, kind: input, shape index: {}]
  %s9 = inlined_call_operand.vmem [shape: f32[128,64], index: 9, kind: input, shape index: {}]
  %s10 = inlined_call_operand.vmem [shape: f32[16,16], index: 10, kind: input, shape index: {}]
  %s11 = inlined_call_operand.vmem [shape: f32[16,64], index: 11, kind: input, shape index: {}]
  %s12 = inlined_call_operand.vmem [shape: f32[64,16], index: 12, kind: input, shape index: {}]
  %s13 = inlined_call_operand.vmem [shape: f32[64,64], index: 13, kind: input, shape index: {}]
  %s14 = inlined_call_operand.vmem [shape: f32[64,64], index: 14, kind: input, shape index: {}]
  %s15 = inlined_call_operand.vmem [shape: f32[64,64], index: 15, kind: input, shape index: {}]
  %s16 = inlined_call_operand.hbm [shape: f32[16,64], index: 16, kind: output, shape index: {}]
  %s17 = sld [smem:[#allocation0]]
  $region74: #{block_forward_pallas.1} parent=0
    _
  %s19 = ssub.s32 1, %s17
  %s20 = scalar_select 0, %s19, %s17
  $region1: #{block_forward_pallas.1} parent=0
    #allocation2 [shape = 'u8[8192]{0}', space=vmem, size = 0x2000, scoped, tag = 'output window, operand 0, single buffered']
    #allocation3 [shape = 's32[1]{0}', space=sflag, size = 0x4, scoped, tag = 'scoped memory for block_forward_pallas.1']
    %21 = vsyncpa [#allocation3], 0
    // Predicated region
    $region2: #{block_forward_pallas.1} parent=1 // pred_check
      _
    $region3: #{block_forward_pallas.1} parent=1 // pred_check_branch
      %23 = sbr.rel (0) target = $region5
    $region4: #{block_forward_pallas.1} parent=1 // pred_region
      _
    $region5: #{block_forward_pallas.1} parent=1 // pred_fallthru
      _
    // Predicated region
    $region6: #{block_forward_pallas.1} parent=1 // pred_check
      _
    $region7: #{block_forward_pallas.1} parent=1 // pred_check_branch
      %25 = sbr.rel (0) target = $region9
    $region8: #{block_forward_pallas.1} parent=1 // pred_region
      _
    $region9: #{block_forward_pallas.1} parent=1 // pred_fallthru
      _
    // Predicated region
    $region10: #{block_forward_pallas.1} parent=1 // pred_check
      _
    $region11: #{block_forward_pallas.1} parent=1 // pred_check_branch
      %27 = sbr.rel (0) target = $region13
    $region12: #{block_forward_pallas.1} parent=1 // pred_region
      _
    $region13: #{block_forward_pallas.1} parent=1 // pred_fallthru
      _
    // Predicated region
    $region14: #{block_forward_pallas.1} parent=1 // pred_check
      _
    $region15: #{block_forward_pallas.1} parent=1 // pred_check_branch
      %29 = sbr.rel (0) target = $region17
    $region16: #{block_forward_pallas.1} parent=1 // pred_region
      _
    $region17: #{block_forward_pallas.1} parent=1 // pred_fallthru
      _
    // Predicated region
    $region18: #{block_forward_pallas.1} parent=1 // pred_check
      _
    $region19: #{block_forward_pallas.1} parent=1 // pred_check_branch
      %31 = sbr.rel (0) target = $region21
    $region20: #{block_forward_pallas.1} parent=1 // pred_region
      _
    $region21: #{block_forward_pallas.1} parent=1 // pred_fallthru
      _
    // Predicated region
    $region22: #{block_forward_pallas.1} parent=1 // pred_check
      _
    $region23: #{block_forward_pallas.1} parent=1 // pred_check_branch
      %33 = sbr.rel (0) target = $region25
    $region24: #{block_forward_pallas.1} parent=1 // pred_region
      _
    $region25: #{block_forward_pallas.1} parent=1 // pred_fallthru
      _
    // Predicated region
    $region26: #{block_forward_pallas.1} parent=1 // pred_check
      _
    $region27: #{block_forward_pallas.1} parent=1 // pred_check_branch
      %35 = sbr.rel (0) target = $region29
    $region28: #{block_forward_pallas.1} parent=1 // pred_region
      _
    $region29: #{block_forward_pallas.1} parent=1 // pred_fallthru
      _
    // Predicated region
    $region30: #{block_forward_pallas.1} parent=1 // pred_check
      _
    $region31: #{block_forward_pallas.1} parent=1 // pred_check_branch
      %37 = sbr.rel (0) target = $region33
    $region32: #{block_forward_pallas.1} parent=1 // pred_region
      _
    $region33: #{block_forward_pallas.1} parent=1 // pred_fallthru
      _
    // Predicated region
    $region34: #{block_forward_pallas.1} parent=1 // pred_check
      _
    $region35: #{block_forward_pallas.1} parent=1 // pred_check_branch
      %39 = sbr.rel (0) target = $region37
    $region36: #{block_forward_pallas.1} parent=1 // pred_region
      _
    $region37: #{block_forward_pallas.1} parent=1 // pred_fallthru
      _
    // Predicated region
    $region38: #{block_forward_pallas.1} parent=1 // pred_check
      _
    $region39: #{block_forward_pallas.1} parent=1 // pred_check_branch
      %41 = sbr.rel (0) target = $region41
    $region40: #{block_forward_pallas.1} parent=1 // pred_region
      _
    $region41: #{block_forward_pallas.1} parent=1 // pred_fallthru
      _
    // Predicated region
    $region42: #{block_forward_pallas.1} parent=1 // pred_check
      _
    $region43: #{block_forward_pallas.1} parent=1 // pred_check_branch
      %43 = sbr.rel (0) target = $region45
    $region44: #{block_forward_pallas.1} parent=1 // pred_region
      _
    $region45: #{block_forward_pallas.1} parent=1 // pred_fallthru
      _
    // Predicated region
    $region46: #{block_forward_pallas.1} parent=1 // pred_check
      _
    $region47: #{block_forward_pallas.1} parent=1 // pred_check_branch
      %45 = sbr.rel (0) target = $region49
    $region48: #{block_forward_pallas.1} parent=1 // pred_region
      _
    $region49: #{block_forward_pallas.1} parent=1 // pred_fallthru
      _
    // Predicated region
    $region50: #{block_forward_pallas.1} parent=1 // pred_check
      _
    $region51: #{block_forward_pallas.1} parent=1 // pred_check_branch
      %47 = sbr.rel (0) target = $region53
    $region52: #{block_forward_pallas.1} parent=1 // pred_region
      _
    $region53: #{block_forward_pallas.1} parent=1 // pred_fallthru
      _
    // Predicated region
    $region54: #{block_forward_pallas.1} parent=1 // pred_check
      _
    $region55: #{block_forward_pallas.1} parent=1 // pred_check_branch
      %49 = sbr.rel (0) target = $region57
    $region56: #{block_forward_pallas.1} parent=1 // pred_region
      _
    $region57: #{block_forward_pallas.1} parent=1 // pred_fallthru
      _
    // Predicated region
    $region58: #{block_forward_pallas.1} parent=1 // pred_check
      _
    $region59: #{block_forward_pallas.1} parent=1 // pred_check_branch
      %51 = sbr.rel (0) target = $region61
    $region60: #{block_forward_pallas.1} parent=1 // pred_region
      _
    $region61: #{block_forward_pallas.1} parent=1 // pred_fallthru
      _
    // Predicated region
    $region62: #{block_forward_pallas.1} parent=1 // pred_check
      _
    $region63: #{block_forward_pallas.1} parent=1 // pred_check_branch
      %53 = sbr.rel (0) target = $region65
    $region64: #{block_forward_pallas.1} parent=1 // pred_region
      _
    $region65: #{block_forward_pallas.1} parent=1 // pred_fallthru
      _
    %v54 = vld [vmem:[%s0] sm:$0xff]
    %v55 = vld [vmem:[%s0 + $0x8] sm:$0xff]
    %v56 = vld [vmem:[%s10] sm:$0xff]
    %v57 = vld [vmem:[%s10 + $0x8] sm:$0xff]
    %v58 = vld [vmem:[%s1] sm:$0x3]
    %vm59 = vcmask 523264
    %v60 = vsel %vm59, %v54, 0.0
    %61 = vadd.xlane.f32.xlu0 %v60
    %v62 = vpop.xlane.xlu0 %61
    %v63 = vsel %vm59, %v55, 0.0
    %64 = vadd.xlane.f32.xlu0 %v63
    %v65 = vpop.xlane.xlu0 %64
    %v66 = vrcp.pop 64.0
    %v67 = vmul.f32 %v62, %v66
    %v68 = vmul.f32 %v65, %v66
    %v69 = vsub.f32 %v54, %v67
    %v70 = vsub.f32 %v55, %v68
    %v71 = vmul.f32 %v69, %v69
    %v72 = vmul.f32 %v70, %v70
    %v73 = vsel %vm59, %v71, 0.0
    %74 = vadd.xlane.f32.xlu0 %v73
    %v75 = vpop.xlane.xlu0 %74
    %v76 = vsel %vm59, %v72, 0.0
    %77 = vadd.xlane.f32.xlu0 %v76
    %v78 = vpop.xlane.xlu0 %77
    %v79 = vmul.f32 %v75, %v66
    %v80 = vmul.f32 %v78, %v66
    %v81 = vadd.f32 %v79, 1e-05
    %v82 = vadd.f32 %v80, 1e-05
    %v83 = vrsqrt.pop %v81
    %v84 = vrsqrt.pop %v82
    %v85 = vmul.f32 %v69, %v83
    %v86 = vmul.f32 %v70, %v84
    %v87 = vlaneseq
    %v88 = vshrl.u32 %v87, 7
    %v89 = vsub.s32 0, %v88
    %v90 = vrot.slane %v58, %v89
    %v91 = vmul.f32 %v85, %v90
    %v92 = vmul.f32 %v86, %v90
    %v93 = vlaneseq
    %v94 = vshrl.u32 %v93, 7
    %v95 = vsub.s32 1, %v94
    %v96 = vrot.slane %v58, %v95
    %v97 = vadd.f32 %v91, %v96
    %v98 = vadd.f32 %v92, %v96
    %vm99 = vcmask 130048
    %v101 = vsel %vm99, %v56, 0
    %v104 = vsel %vm99, %v57, 0
    %106 = vmatprep.subr.mxu0 0.0
    %107 = vmatpush1.msra.mxu0 %v97
    %108 = vmatprep.subr.mxu0 0.0
    %109 = vmatpush1.msra.mxu0 %v98
    %110 = vmatprep.subr.mxu0 0.0
    %111 = vmatpush1.msra.mxu0 0.0
    %112 = vmatprep.subr.mxu0 0.0
    %113 = vmatpush1.msra.mxu0 0.0
    %114 = vmatprep.subr.mxu0 0.0
    %115 = vmatpush1.msra.mxu0 0.0
    %116 = vmatprep.subr.mxu0 0.0
    %117 = vmatpush1.msra.mxu0 0.0
    %118 = vmatprep.subr.mxu0 0.0
    %119 = vmatpush1.msra.mxu0 0.0
    %120 = vmatprep.subr.mxu0 0.0
    %121 = vmatpush1.msra.mxu0 0.0
    %122 = vmatprep.subr.mxu0 0.0
    %123 = vmatpush1.msra.mxu0 0.0
    %124 = vmatprep.subr.mxu0 0.0
    %125 = vmatpush1.msra.mxu0 0.0
    %126 = vmatprep.subr.mxu0 0.0
    %127 = vmatpush1.msra.mxu0 0.0
    %128 = vmatprep.subr.mxu0 0.0
    %129 = vmatpush1.msra.mxu0 0.0
    %130 = vmatprep.subr.mxu0 0.0
    %131 = vmatpush1.msra.mxu0 0.0
    %132 = vmatprep.subr.mxu0 0.0
    %133 = vmatpush1.msra.mxu0 0.0
    %134 = vmatprep.subr.mxu0 0.0
    %135 = vmatpush1.msra.mxu0 0.0
    %136 = vmatprep.subr.mxu0 0.0
    %137 = vmatpush1.msra.mxu0 0.0
    %138 = vmatprep.subr.mxu0 0.0
    %139 = vmatpush1.msra.mxu0 0.0
    %140 = vmatprep.subr.mxu0 0.0
    %141 = vmatpush1.msra.mxu0 0.0
    %142 = vmatprep.subr.mxu0 0.0
    %143 = vmatpush1.msra.mxu0 0.0
    %144 = vmatprep.subr.mxu0 0.0
    %145 = vmatpush1.msra.mxu0 0.0
    %146 = vmatprep.subr.mxu0 0.0
    %147 = vmatpush1.msra.mxu0 0.0
    %148 = vmatprep.subr.mxu0 0.0
    %149 = vmatpush1.msra.mxu0 0.0
    %150 = vmatprep.subr.mxu0 0.0
    %151 = vmatpush1.msra.mxu0 0.0
    %152 = vmatprep.subr.mxu0 0.0
    %153 = vmatpush1.msra.mxu0 0.0
    %154 = vmatprep.subr.mxu0 0.0
    %155 = vmatpush1.msra.mxu0 0.0
    %156 = vmatprep.subr.mxu0 0.0
    %157 = vmatpush1.msra.mxu0 0.0
    %158 = vmatprep.subr.mxu0 0.0
    %159 = vmatpush1.msra.mxu0 0.0
    %160 = vmatprep.subr.mxu0 0.0
    %161 = vmatpush1.msra.mxu0 0.0
    %162 = vmatprep.subr.mxu0 0.0
    %163 = vmatpush1.msra.mxu0 0.0
    %164 = vmatprep.subr.mxu0 0.0
    %165 = vmatpush1.msra.mxu0 0.0
    %166 = vmatprep.subr.mxu0 0.0
    %167 = vmatpush1.msra.mxu0 0.0
    %168 = vmatprep.subr.mxu0 0.0
    %169 = vmatpush1.msra.mxu0 0.0
    %170 = vmatprep.mubr.f32.mxu0 0.0
    %171 = vmatmul.mubr.f32.gmra.mrb[0].mxu0 %v101
    %v172 = vpop.f32.mrb[0].mxu0
    %v173 = vadd.f32 0.0, %v172
    %v174 = vpop.f32.mrb[0].mxu0
    %175 = vmatprep.mubr.f32.mxu0 0.0
    %176 = vmatmul.mubr.f32.gmra.mrb[0].mxu0 %v104
    %v177 = vpop.f32.mrb[0].mxu0
    %v178 = vadd.f32 0.0, %v177
    %v179 = vpop.f32.mrb[0].mxu0
    %180 = vdwg.mxu0
    %v181 = vld [vmem:[%s6] sm:$0xff]
    %v182 = vld [vmem:[%s6 + $0x8] sm:$0xff]
    %v183 = vld [vmem:[%s6 + $0x10] sm:$0xff]
    %v184 = vld [vmem:[%s6 + $0x18] sm:$0xff]
    %v185 = vld [vmem:[%s6 + $0x20] sm:$0xff]
    %v186 = vld [vmem:[%s6 + $0x28] sm:$0xff]
    %v187 = vld [vmem:[%s6 + $0x30] sm:$0xff]
    %v188 = vld [vmem:[%s6 + $0x38] sm:$0xff]
    %v189 = vld [vmem:[%s6 + $0x40] sm:$0xff]
    %v190 = vld [vmem:[%s6 + $0x48] sm:$0xff]
    %v191 = vld [vmem:[%s6 + $0x50] sm:$0xff]
    %v192 = vld [vmem:[%s6 + $0x58] sm:$0xff]
    %v193 = vld [vmem:[%s6 + $0x60] sm:$0xff]
    %v194 = vld [vmem:[%s6 + $0x68] sm:$0xff]
    %v195 = vld [vmem:[%s6 + $0x70] sm:$0xff]
    %v196 = vld [vmem:[%s6 + $0x78] sm:$0xff]
    %v197 = vld [vmem:[%s6 + $0x80] sm:$0xff]
    %v198 = vld [vmem:[%s6 + $0x88] sm:$0xff]
    %v199 = vld [vmem:[%s6 + $0x90] sm:$0xff]
    %v200 = vld [vmem:[%s6 + $0x98] sm:$0xff]
    %v201 = vld [vmem:[%s6 + $0xa0] sm:$0xff]
    %v202 = vld [vmem:[%s6 + $0xa8] sm:$0xff]
    %v203 = vld [vmem:[%s6 + $0xb0] sm:$0xff]
    %v204 = vld [vmem:[%s6 + $0xb8] sm:$0xff]
    %v205 = vld [vmem:[%s6 + $0xc0] sm:$0xff]
    %v206 = vld [vmem:[%s6 + $0xc8] sm:$0xff]
    %v207 = vld [vmem:[%s6 + $0xd0] sm:$0xff]
    %v208 = vld [vmem:[%s6 + $0xd8] sm:$0xff]
    %v209 = vld [vmem:[%s6 + $0xe0] sm:$0xff]
    %v210 = vld [vmem:[%s6 + $0xe8] sm:$0xff]
    %v211 = vld [vmem:[%s6 + $0xf0] sm:$0xff]
    %v212 = vld [vmem:[%s6 + $0xf8] sm:$0xff]
    %v214 = vsel %vm59, %v173, 0
    %v217 = vsel %vm59, %v178, 0
    %219 = vmatprep.subr.mxu0 %v198
    %220 = vmatpush1.msra.mxu0 %v197
    %221 = vmatprep.subr.mxu0 %v200
    %222 = vmatpush1.msra.mxu0 %v199
    %223 = vmatprep.subr.mxu0 %v202
    %224 = vmatpush1.msra.mxu0 %v201
    %225 = vmatprep.subr.mxu0 %v204
    %226 = vmatpush1.msra.mxu0 %v203
    %227 = vmatprep.subr.mxu0 %v206
    %228 = vmatpush1.msra.mxu0 %v205
    %229 = vmatprep.subr.mxu0 %v208
    %230 = vmatpush1.msra.mxu0 %v207
    %231 = vmatprep.subr.mxu0 %v210
    %232 = vmatpush1.msra.mxu0 %v209
    %233 = vmatprep.subr.mxu0 %v212
    %234 = vmatpush1.msra.mxu0 %v211
    %235 = vmatprep.subr.mxu0 0.0
    %236 = vmatpush1.msra.mxu0 0.0
    %237 = vmatprep.subr.mxu0 0.0
    %238 = vmatpush1.msra.mxu0 0.0
    %239 = vmatprep.subr.mxu0 0.0
    %240 = vmatpush1.msra.mxu0 0.0
    %241 = vmatprep.subr.mxu0 0.0
    %242 = vmatpush1.msra.mxu0 0.0
    %243 = vmatprep.subr.mxu0 0.0
    %244 = vmatpush1.msra.mxu0 0.0
    %245 = vmatprep.subr.mxu0 0.0
    %246 = vmatpush1.msra.mxu0 0.0
    %247 = vmatprep.subr.mxu0 0.0
    %248 = vmatpush1.msra.mxu0 0.0
    %249 = vmatprep.subr.mxu0 0.0
    %250 = vmatpush1.msra.mxu0 0.0
    %251 = vmatprep.subr.mxu0 0.0
    %252 = vmatpush1.msra.mxu0 0.0
    %253 = vmatprep.subr.mxu0 0.0
    %254 = vmatpush1.msra.mxu0 0.0
    %255 = vmatprep.subr.mxu0 0.0
    %256 = vmatpush1.msra.mxu0 0.0
    %257 = vmatprep.subr.mxu0 0.0
    %258 = vmatpush1.msra.mxu0 0.0
    %259 = vmatprep.subr.mxu0 0.0
    %260 = vmatpush1.msra.mxu0 0.0
    %261 = vmatprep.subr.mxu0 0.0
    %262 = vmatpush1.msra.mxu0 0.0
    %263 = vmatprep.subr.mxu0 0.0
    %264 = vmatpush1.msra.mxu0 0.0
    %265 = vmatprep.subr.mxu0 0.0
    %266 = vmatpush1.msra.mxu0 0.0
    %267 = vmatprep.subr.mxu0 0.0
    %268 = vmatpush1.msra.mxu0 0.0
    %269 = vmatprep.subr.mxu0 0.0
    %270 = vmatpush1.msra.mxu0 0.0
    %271 = vmatprep.subr.mxu0 0.0
    %272 = vmatpush1.msra.mxu0 0.0
    %273 = vmatprep.subr.mxu0 0.0
    %274 = vmatpush1.msra.mxu0 0.0
    %275 = vmatprep.subr.mxu0 0.0
    %276 = vmatpush1.msra.mxu0 0.0
    %277 = vmatprep.subr.mxu0 0.0
    %278 = vmatpush1.msra.mxu0 0.0
    %279 = vmatprep.subr.mxu0 0.0
    %280 = vmatpush1.msra.mxu0 0.0
    %281 = vmatprep.subr.mxu0 0.0
    %282 = vmatpush1.msra.mxu0 0.0
    %283 = vmatprep.mubr.f32.mxu0 0.0
    %284 = vmatmul.mubr.f32.gmra.mrb[0].mxu0 %v214
    %v285 = vpop.f32.mrb[0].mxu0
    %v286 = vadd.f32 0.0, %v285
    %v287 = vpop.f32.mrb[0].mxu0
    %v288 = vadd.f32 0.0, %v287
    %289 = vmatprep.mubr.f32.mxu0 0.0
    %290 = vmatmul.mubr.f32.gmra.mrb[0].mxu0 %v217
    %v291 = vpop.f32.mrb[0].mxu0
    %v292 = vadd.f32 0.0, %v291
    %v293 = vpop.f32.mrb[0].mxu0
    %v294 = vadd.f32 0.0, %v293
    %295 = vdwg.mxu0
    %v297 = vsel %vm59, %v97, 0
    %v300 = vsel %vm59, %v98, 0
    %302 = vmatprep.subr.mxu0 %v182
    %303 = vmatpush1.msra.mxu0 %v181
    %304 = vmatprep.subr.mxu0 %v184
    %305 = vmatpush1.msra.mxu0 %v183
    %306 = vmatprep.subr.mxu0 %v186
    %307 = vmatpush1.msra.mxu0 %v185
    %308 = vmatprep.subr.mxu0 %v188
    %309 = vmatpush1.msra.mxu0 %v187
    %310 = vmatprep.subr.mxu0 %v190
    %311 = vmatpush1.msra.mxu0 %v189
    %312 = vmatprep.subr.mxu0 %v192
    %313 = vmatpush1.msra.mxu0 %v191
    %314 = vmatprep.subr.mxu0 %v194
    %315 = vmatpush1.msra.mxu0 %v193
    %316 = vmatprep.subr.mxu0 %v196
    %317 = vmatpush1.msra.mxu0 %v195
    %318 = vmatprep.subr.mxu0 0.0
    %319 = vmatpush1.msra.mxu0 0.0
    %320 = vmatprep.subr.mxu0 0.0
    %321 = vmatpush1.msra.mxu0 0.0
    %322 = vmatprep.subr.mxu0 0.0
    %323 = vmatpush1.msra.mxu0 0.0
    %324 = vmatprep.subr.mxu0 0.0
    %325 = vmatpush1.msra.mxu0 0.0
    %326 = vmatprep.subr.mxu0 0.0
    %327 = vmatpush1.msra.mxu0 0.0
    %328 = vmatprep.subr.mxu0 0.0
    %329 = vmatpush1.msra.mxu0 0.0
    %330 = vmatprep.subr.mxu0 0.0
    %331 = vmatpush1.msra.mxu0 0.0
    %332 = vmatprep.subr.mxu0 0.0
    %333 = vmatpush1.msra.mxu0 0.0
    %334 = vmatprep.subr.mxu0 0.0
    %335 = vmatpush1.msra.mxu0 0.0
    %336 = vmatprep.subr.mxu0 0.0
    %337 = vmatpush1.msra.mxu0 0.0
    %338 = vmatprep.subr.mxu0 0.0
    %339 = vmatpush1.msra.mxu0 0.0
    %340 = vmatprep.subr.mxu0 0.0
    %341 = vmatpush1.msra.mxu0 0.0
    %342 = vmatprep.subr.mxu0 0.0
    %343 = vmatpush1.msra.mxu0 0.0
    %344 = vmatprep.subr.mxu0 0.0
    %345 = vmatpush1.msra.mxu0 0.0
    %346 = vmatprep.subr.mxu0 0.0
    %347 = vmatpush1.msra.mxu0 0.0
    %348 = vmatprep.subr.mxu0 0.0
    %349 = vmatpush1.msra.mxu0 0.0
    %350 = vmatprep.subr.mxu0 0.0
    %351 = vmatpush1.msra.mxu0 0.0
    %352 = vmatprep.subr.mxu0 0.0
    %353 = vmatpush1.msra.mxu0 0.0
    %354 = vmatprep.subr.mxu0 0.0
    %355 = vmatpush1.msra.mxu0 0.0
    %356 = vmatprep.subr.mxu0 0.0
    %357 = vmatpush1.msra.mxu0 0.0
    %358 = vmatprep.subr.mxu0 0.0
    %359 = vmatpush1.msra.mxu0 0.0
    %360 = vmatprep.subr.mxu0 0.0
    %361 = vmatpush1.msra.mxu0 0.0
    %362 = vmatprep.subr.mxu0 0.0
    %363 = vmatpush1.msra.mxu0 0.0
    %364 = vmatprep.subr.mxu0 0.0
    %365 = vmatpush1.msra.mxu0 0.0
    %366 = vmatprep.mubr.f32.mxu0 0.0
    %367 = vmatmul.mubr.f32.gmra.mrb[0].mxu0 %v297
    %v368 = vpop.f32.mrb[0].mxu0
    %v369 = vadd.f32 %v286, %v368
    %v370 = vpop.f32.mrb[0].mxu0
    %v371 = vadd.f32 %v288, %v370
    %372 = vmatprep.mubr.f32.mxu0 0.0
    %373 = vmatmul.mubr.f32.gmra.mrb[0].mxu0 %v300
    %v374 = vpop.f32.mrb[0].mxu0
    %v375 = vadd.f32 %v292, %v374
    %v376 = vpop.f32.mrb[0].mxu0
    %v377 = vadd.f32 %v294, %v376
    %378 = vdwg.mxu0
    %v379 = vxor.u32 %v371, 2147483648
    %v380 = vxor.u32 %v377, 2147483648
    %v381 = vmul.f32 %v379, 1.442695
    %v382 = vpow.pop %v381
    %v383 = vmul.f32 %v380, 1.442695
    %v384 = vpow.pop %v383
    %v385 = vadd.f32 %v382, 1.0
    %v386 = vadd.f32 %v384, 1.0
    %v387 = vrcp.pop %v385
    %v388 = vmul.f32 1.0, %v387
    %v389 = vrcp.pop %v386
    %v390 = vmul.f32 1.0, %v389
    %v391 = vmul.f32 %v371, %v388
    %v392 = vmul.f32 %v377, %v390
    %v393 = vld [vmem:[%s5] sm:$0xff]
    %v394 = vld [vmem:[%s5 + $0x8] sm:$0xff]
    %v395 = vmul.f32 %v369, %v393
    %v396 = vmul.f32 %v375, %v394
    %v397 = vld [vmem:[%s12] sm:$0xff]
    %v398 = vld [vmem:[%s12 + $0x8] sm:$0xff]
    %v399 = vld [vmem:[%s12 + $0x10] sm:$0xff]
    %v400 = vld [vmem:[%s12 + $0x18] sm:$0xff]
    %v401 = vld [vmem:[%s12 + $0x20] sm:$0xff]
    %v402 = vld [vmem:[%s12 + $0x28] sm:$0xff]
    %v403 = vld [vmem:[%s12 + $0x30] sm:$0xff]
    %v404 = vld [vmem:[%s12 + $0x38] sm:$0xff]
    %407 = vrot.lane.b32.xlu0 %v369, 64
    %v408 = vpop.permute.xlu0 %407
    %409 = vrot.lane.b32.xlu0 %v375, 64
    %v410 = vpop.permute.xlu0 %409
    %v414 = vsel %vm99, %v397, 0
    %v417 = vsel %vm99, %v398, 0
    %v420 = vsel %vm99, %v399, 0
    %v423 = vsel %vm99, %v400, 0
    %v426 = vsel %vm99, %v401, 0
    %v429 = vsel %vm99, %v402, 0
    %v432 = vsel %vm99, %v403, 0
    %v435 = vsel %vm99, %v404, 0
    %437 = vmatprep.subr.mxu0 0.0
    %438 = vmatpush1.msra.mxu0 %v408
    %439 = vmatprep.subr.mxu0 0.0
    %440 = vmatpush1.msra.mxu0 %v410
    %441 = vmatprep.subr.mxu0 0.0
    %442 = vmatpush1.msra.mxu0 0.0
    %443 = vmatprep.subr.mxu0 0.0
    %444 = vmatpush1.msra.mxu0 0.0
    %445 = vmatprep.subr.mxu0 0.0
    %446 = vmatpush1.msra.mxu0 0.0
    %447 = vmatprep.subr.mxu0 0.0
    %448 = vmatpush1.msra.mxu0 0.0
    %449 = vmatprep.subr.mxu0 0.0
    %450 = vmatpush1.msra.mxu0 0.0
    %451 = vmatprep.subr.mxu0 0.0
    %452 = vmatpush1.msra.mxu0 0.0
    %453 = vmatprep.subr.mxu0 0.0
    %454 = vmatpush1.msra.mxu0 0.0
    %455 = vmatprep.subr.mxu0 0.0
    %456 = vmatpush1.msra.mxu0 0.0
    %457 = vmatprep.subr.mxu0 0.0
    %458 = vmatpush1.msra.mxu0 0.0
    %459 = vmatprep.subr.mxu0 0.0
    %460 = vmatpush1.msra.mxu0 0.0
    %461 = vmatprep.subr.mxu0 0.0
    %462 = vmatpush1.msra.mxu0 0.0
    %463 = vmatprep.subr.mxu0 0.0
    %464 = vmatpush1.msra.mxu0 0.0
    %465 = vmatprep.subr.mxu0 0.0
    %466 = vmatpush1.msra.mxu0 0.0
    %467 = vmatprep.subr.mxu0 0.0
    %468 = vmatpush1.msra.mxu0 0.0
    %469 = vmatprep.subr.mxu0 0.0
    %470 = vmatpush1.msra.mxu0 0.0
    %471 = vmatprep.subr.mxu0 0.0
    %472 = vmatpush1.msra.mxu0 0.0
    %473 = vmatprep.subr.mxu0 0.0
    %474 = vmatpush1.msra.mxu0 0.0
    %475 = vmatprep.subr.mxu0 0.0
    %476 = vmatpush1.msra.mxu0 0.0
    %477 = vmatprep.subr.mxu0 0.0
    %478 = vmatpush1.msra.mxu0 0.0
    %479 = vmatprep.subr.mxu0 0.0
    %480 = vmatpush1.msra.mxu0 0.0
    %481 = vmatprep.subr.mxu0 0.0
    %482 = vmatpush1.msra.mxu0 0.0
    %483 = vmatprep.subr.mxu0 0.0
    %484 = vmatpush1.msra.mxu0 0.0
    %485 = vmatprep.subr.mxu0 0.0
    %486 = vmatpush1.msra.mxu0 0.0
    %487 = vmatprep.subr.mxu0 0.0
    %488 = vmatpush1.msra.mxu0 0.0
    %489 = vmatprep.subr.mxu0 0.0
    %490 = vmatpush1.msra.mxu0 0.0
    %491 = vmatprep.subr.mxu0 0.0
    %492 = vmatpush1.msra.mxu0 0.0
    %493 = vmatprep.subr.mxu0 0.0
    %494 = vmatpush1.msra.mxu0 0.0
    %495 = vmatprep.subr.mxu0 0.0
    %496 = vmatpush1.msra.mxu0 0.0
    %497 = vmatprep.subr.mxu0 0.0
    %498 = vmatpush1.msra.mxu0 0.0
    %499 = vmatprep.subr.mxu0 0.0
    %500 = vmatpush1.msra.mxu0 0.0
    %501 = vmatprep.mubr.f32.mxu0 0.0
    %502 = vmatmul.mubr.f32.gmra.mrb[0].mxu0 %v414
    %v503 = vpop.f32.mrb[0].mxu0
    %v504 = vadd.f32 0.0, %v503
    %v505 = vpop.f32.mrb[0].mxu0
    %506 = vmatprep.mubr.f32.mxu0 0.0
    %507 = vmatmul.mubr.f32.gmra.mrb[0].mxu0 %v417
    %v508 = vpop.f32.mrb[0].mxu0
    %v509 = vadd.f32 0.0, %v508
    %v510 = vpop.f32.mrb[0].mxu0
    %511 = vmatprep.mubr.f32.mxu0 0.0
    %512 = vmatmul.mubr.f32.gmra.mrb[0].mxu0 %v420
    %v513 = vpop.f32.mrb[0].mxu0
    %v514 = vadd.f32 0.0, %v513
    %v515 = vpop.f32.mrb[0].mxu0
    %516 = vmatprep.mubr.f32.mxu0 0.0
    %517 = vmatmul.mubr.f32.gmra.mrb[0].mxu0 %v423
    %v518 = vpop.f32.mrb[0].mxu0
    %v519 = vadd.f32 0.0, %v518
    %v520 = vpop.f32.mrb[0].mxu0
    %521 = vmatprep.mubr.f32.mxu0 0.0
    %522 = vmatmul.mubr.f32.gmra.mrb[0].mxu0 %v426
    %v523 = vpop.f32.mrb[0].mxu0
    %v524 = vadd.f32 0.0, %v523
    %v525 = vpop.f32.mrb[0].mxu0
    %526 = vmatprep.mubr.f32.mxu0 0.0
    %527 = vmatmul.mubr.f32.gmra.mrb[0].mxu0 %v429
    %v528 = vpop.f32.mrb[0].mxu0
    %v529 = vadd.f32 0.0, %v528
    %v530 = vpop.f32.mrb[0].mxu0
    %531 = vmatprep.mubr.f32.mxu0 0.0
    %532 = vmatmul.mubr.f32.gmra.mrb[0].mxu0 %v432
    %v533 = vpop.f32.mrb[0].mxu0
    %v534 = vadd.f32 0.0, %v533
    %v535 = vpop.f32.mrb[0].mxu0
    %536 = vmatprep.mubr.f32.mxu0 0.0
    %537 = vmatmul.mubr.f32.gmra.mrb[0].mxu0 %v435
    %v538 = vpop.f32.mrb[0].mxu0
    %v539 = vadd.f32 0.0, %v538
    %v540 = vpop.f32.mrb[0].mxu0
    %541 = vdwg.mxu0
    %542 = vmatprep.subr.mxu0 0.0
    %543 = vmatpush1.msra.mxu0 %v371
    %544 = vmatprep.subr.mxu0 0.0
    %545 = vmatpush1.msra.mxu0 %v377
    %546 = vmatprep.subr.mxu0 0.0
    %547 = vmatpush1.msra.mxu0 0.0
    %548 = vmatprep.subr.mxu0 0.0
    %549 = vmatpush1.msra.mxu0 0.0
    %550 = vmatprep.subr.mxu0 0.0
    %551 = vmatpush1.msra.mxu0 0.0
    %552 = vmatprep.subr.mxu0 0.0
    %553 = vmatpush1.msra.mxu0 0.0
    %554 = vmatprep.subr.mxu0 0.0
    %555 = vmatpush1.msra.mxu0 0.0
    %556 = vmatprep.subr.mxu0 0.0
    %557 = vmatpush1.msra.mxu0 0.0
    %558 = vmatprep.subr.mxu0 0.0
    %559 = vmatpush1.msra.mxu0 0.0
    %560 = vmatprep.subr.mxu0 0.0
    %561 = vmatpush1.msra.mxu0 0.0
    %562 = vmatprep.subr.mxu0 0.0
    %563 = vmatpush1.msra.mxu0 0.0
    %564 = vmatprep.subr.mxu0 0.0
    %565 = vmatpush1.msra.mxu0 0.0
    %566 = vmatprep.subr.mxu0 0.0
    %567 = vmatpush1.msra.mxu0 0.0
    %568 = vmatprep.subr.mxu0 0.0
    %569 = vmatpush1.msra.mxu0 0.0
    %570 = vmatprep.subr.mxu0 0.0
    %571 = vmatpush1.msra.mxu0 0.0
    %572 = vmatprep.subr.mxu0 0.0
    %573 = vmatpush1.msra.mxu0 0.0
    %574 = vmatprep.subr.mxu0 0.0
    %575 = vmatpush1.msra.mxu0 0.0
    %576 = vmatprep.subr.mxu0 0.0
    %577 = vmatpush1.msra.mxu0 0.0
    %578 = vmatprep.subr.mxu0 0.0
    %579 = vmatpush1.msra.mxu0 0.0
    %580 = vmatprep.subr.mxu0 0.0
    %581 = vmatpush1.msra.mxu0 0.0
    %582 = vmatprep.subr.mxu0 0.0
    %583 = vmatpush1.msra.mxu0 0.0
    %584 = vmatprep.subr.mxu0 0.0
    %585 = vmatpush1.msra.mxu0 0.0
    %586 = vmatprep.subr.mxu0 0.0
    %587 = vmatpush1.msra.mxu0 0.0
    %588 = vmatprep.subr.mxu0 0.0
    %589 = vmatpush1.msra.mxu0 0.0
    %590 = vmatprep.subr.mxu0 0.0
    %591 = vmatpush1.msra.mxu0 0.0
    %592 = vmatprep.subr.mxu0 0.0
    %593 = vmatpush1.msra.mxu0 0.0
    %594 = vmatprep.subr.mxu0 0.0
    %595 = vmatpush1.msra.mxu0 0.0
    %596 = vmatprep.subr.mxu0 0.0
    %597 = vmatpush1.msra.mxu0 0.0
    %598 = vmatprep.subr.mxu0 0.0
    %599 = vmatpush1.msra.mxu0 0.0
    %600 = vmatprep.subr.mxu0 0.0
    %601 = vmatpush1.msra.mxu0 0.0
    %602 = vmatprep.subr.mxu0 0.0
    %603 = vmatpush1.msra.mxu0 0.0
    %604 = vmatprep.subr.mxu0 0.0
    %605 = vmatpush1.msra.mxu0 0.0
    %606 = vmatprep.mubr.f32.mxu0 0.0
    %607 = vmatmul.mubr.f32.gmra.mrb[0].mxu0 %v414
    %v608 = vpop.f32.mrb[0].mxu0
    %v609 = vadd.f32 0.0, %v608
    %v610 = vpop.f32.mrb[0].mxu0
    %611 = vmatprep.mubr.f32.mxu0 0.0
    %612 = vmatmul.mubr.f32.gmra.mrb[0].mxu0 %v417
    %v613 = vpop.f32.mrb[0].mxu0
    %v614 = vadd.f32 0.0, %v613
    %v615 = vpop.f32.mrb[0].mxu0
    %616 = vmatprep.mubr.f32.mxu0 0.0
    %617 = vmatmul.mubr.f32.gmra.mrb[0].mxu0 %v420
    %v618 = vpop.f32.mrb[0].mxu0
    %v619 = vadd.f32 0.0, %v618
    %v620 = vpop.f32.mrb[0].mxu0
    %621 = vmatprep.mubr.f32.mxu0 0.0
    %622 = vmatmul.mubr.f32.gmra.mrb[0].mxu0 %v423
    %v623 = vpop.f32.mrb[0].mxu0
    %v624 = vadd.f32 0.0, %v623
    %v625 = vpop.f32.mrb[0].mxu0
    %626 = vmatprep.mubr.f32.mxu0 0.0
    %627 = vmatmul.mubr.f32.gmra.mrb[0].mxu0 %v426
    %v628 = vpop.f32.mrb[0].mxu0
    %v629 = vadd.f32 0.0, %v628
    %v630 = vpop.f32.mrb[0].mxu0
    %631 = vmatprep.mubr.f32.mxu0 0.0
    %632 = vmatmul.mubr.f32.gmra.mrb[0].mxu0 %v429
    %v633 = vpop.f32.mrb[0].mxu0
    %v634 = vadd.f32 0.0, %v633
    %v635 = vpop.f32.mrb[0].mxu0
    %636 = vmatprep.mubr.f32.mxu0 0.0
    %637 = vmatmul.mubr.f32.gmra.mrb[0].mxu0 %v432
    %v638 = vpop.f32.mrb[0].mxu0
    %v639 = vadd.f32 0.0, %v638
    %v640 = vpop.f32.mrb[0].mxu0
    %641 = vmatprep.mubr.f32.mxu0 0.0
    %642 = vmatmul.mubr.f32.gmra.mrb[0].mxu0 %v435
    %v643 = vpop.f32.mrb[0].mxu0
    %v644 = vadd.f32 0.0, %v643
    %v645 = vpop.f32.mrb[0].mxu0
    %646 = vdwg.mxu0
    %v647 = vld [vmem:[%s13] sm:$0xff]
    %v648 = vld [vmem:[%s13 + $0x8] sm:$0xff]
    %v649 = vld [vmem:[%s13 + $0x10] sm:$0xff]
    %v650 = vld [vmem:[%s13 + $0x18] sm:$0xff]
    %v651 = vld [vmem:[%s13 + $0x20] sm:$0xff]
    %v652 = vld [vmem:[%s13 + $0x28] sm:$0xff]
    %v653 = vld [vmem:[%s13 + $0x30] sm:$0xff]
    %v654 = vld [vmem:[%s13 + $0x38] sm:$0xff]
    %v655 = vmul.f32 %v504, %v647
    %v656 = vmul.f32 %v509, %v648
    %v657 = vmul.f32 %v514, %v649
    %v658 = vmul.f32 %v519, %v650
    %v659 = vmul.f32 %v524, %v651
    %v660 = vmul.f32 %v529, %v652
    %v661 = vmul.f32 %v534, %v653
    %v662 = vmul.f32 %v539, %v654
    %v663 = vld [vmem:[%s14] sm:$0xff]
    %v664 = vld [vmem:[%s14 + $0x8] sm:$0xff]
    %v665 = vld [vmem:[%s14 + $0x10] sm:$0xff]
    %v666 = vld [vmem:[%s14 + $0x18] sm:$0xff]
    %v667 = vld [vmem:[%s14 + $0x20] sm:$0xff]
    %v668 = vld [vmem:[%s14 + $0x28] sm:$0xff]
    %v669 = vld [vmem:[%s14 + $0x30] sm:$0xff]
    %v670 = vld [vmem:[%s14 + $0x38] sm:$0xff]
    %v671 = vmul.f32 %v609, %v663
    %v672 = vmul.f32 %v614, %v664
    %v673 = vmul.f32 %v619, %v665
    %v674 = vmul.f32 %v624, %v666
    %v675 = vmul.f32 %v629, %v667
    %v676 = vmul.f32 %v634, %v668
    %v677 = vmul.f32 %v639, %v669
    %v678 = vmul.f32 %v644, %v670
    %v680 = vsel %vm59, %v395, 0
    %v683 = vsel %vm59, %v396, 0
    %v686 = vsel %vm59, %v655, 0
    %v689 = vsel %vm59, %v656, 0
    %v692 = vsel %vm59, %v657, 0
    %v695 = vsel %vm59, %v658, 0
    %v698 = vsel %vm59, %v659, 0
    %v701 = vsel %vm59, %v660, 0
    %v704 = vsel %vm59, %v661, 0
    %v707 = vsel %vm59, %v662, 0
    %709 = vmatprep.subr.mxu0 0.0
    %710 = vmatpush1.xpose.msra.mxu0 %v686
    %711 = vmatprep.subr.mxu0 0.0
    %712 = vmatpush1.xpose.msra.mxu0 %v689
    %713 = vmatprep.subr.mxu0 0.0
    %714 = vmatpush1.xpose.msra.mxu0 %v692
    %715 = vmatprep.subr.mxu0 0.0
    %716 = vmatpush1.xpose.msra.mxu0 %v695
    %717 = vmatprep.subr.mxu0 0.0
    %718 = vmatpush1.xpose.msra.mxu0 %v698
    %719 = vmatprep.subr.mxu0 0.0
    %720 = vmatpush1.xpose.msra.mxu0 %v701
    %721 = vmatprep.subr.mxu0 0.0
    %722 = vmatpush1.xpose.msra.mxu0 %v704
    %723 = vmatprep.subr.mxu0 0.0
    %724 = vmatpush1.xpose.msra.mxu0 %v707
    %725 = vmatprep.subr.mxu0 0.0
    %726 = vmatpush1.xpose.msra.mxu0 0.0
    %727 = vmatprep.subr.mxu0 0.0
    %728 = vmatpush1.xpose.msra.mxu0 0.0
    %729 = vmatprep.subr.mxu0 0.0
    %730 = vmatpush1.xpose.msra.mxu0 0.0
    %731 = vmatprep.subr.mxu0 0.0
    %732 = vmatpush1.xpose.msra.mxu0 0.0
    %733 = vmatprep.subr.mxu0 0.0
    %734 = vmatpush1.xpose.msra.mxu0 0.0
    %735 = vmatprep.subr.mxu0 0.0
    %736 = vmatpush1.xpose.msra.mxu0 0.0
    %737 = vmatprep.subr.mxu0 0.0
    %738 = vmatpush1.xpose.msra.mxu0 0.0
    %739 = vmatprep.subr.mxu0 0.0
    %740 = vmatpush1.xpose.msra.mxu0 0.0
    %741 = vmatprep.subr.mxu0 0.0
    %742 = vmatpush1.xpose.msra.mxu0 0.0
    %743 = vmatprep.subr.mxu0 0.0
    %744 = vmatpush1.xpose.msra.mxu0 0.0
    %745 = vmatprep.subr.mxu0 0.0
    %746 = vmatpush1.xpose.msra.mxu0 0.0
    %747 = vmatprep.subr.mxu0 0.0
    %748 = vmatpush1.xpose.msra.mxu0 0.0
    %749 = vmatprep.subr.mxu0 0.0
    %750 = vmatpush1.xpose.msra.mxu0 0.0
    %751 = vmatprep.subr.mxu0 0.0
    %752 = vmatpush1.xpose.msra.mxu0 0.0
    %753 = vmatprep.subr.mxu0 0.0
    %754 = vmatpush1.xpose.msra.mxu0 0.0
    %755 = vmatprep.subr.mxu0 0.0
    %756 = vmatpush1.xpose.msra.mxu0 0.0
    %757 = vmatprep.subr.mxu0 0.0
    %758 = vmatpush1.xpose.msra.mxu0 0.0
    %759 = vmatprep.subr.mxu0 0.0
    %760 = vmatpush1.xpose.msra.mxu0 0.0
    %761 = vmatprep.subr.mxu0 0.0
    %762 = vmatpush1.xpose.msra.mxu0 0.0
    %763 = vmatprep.subr.mxu0 0.0
    %764 = vmatpush1.xpose.msra.mxu0 0.0
    %765 = vmatprep.subr.mxu0 0.0
    %766 = vmatpush1.xpose.msra.mxu0 0.0
    %767 = vmatprep.subr.mxu0 0.0
    %768 = vmatpush1.xpose.msra.mxu0 0.0
    %769 = vmatprep.subr.mxu0 0.0
    %770 = vmatpush1.xpose.msra.mxu0 0.0
    %771 = vmatprep.subr.mxu0 0.0
    %772 = vmatpush1.xpose.msra.mxu0 0.0
    %773 = vmatprep.mubr.f32.mxu0 0.0
    %774 = vmatmul.mubr.f32.gmra.mrb[0].mxu0 %v680
    %v775 = vpop.f32.mrb[0].mxu0
    %v776 = vadd.f32 0.0, %v775
    %v777 = vpop.f32.mrb[0].mxu0
    %778 = vmatprep.mubr.f32.mxu0 0.0
    %779 = vmatmul.mubr.f32.gmra.mrb[0].mxu0 %v683
    %v780 = vpop.f32.mrb[0].mxu0
    %v781 = vadd.f32 0.0, %v780
    %v782 = vpop.f32.mrb[0].mxu0
    %783 = vdwg.mxu0
    %v784 = vld [vmem:[%s11] sm:$0xff]
    %v785 = vld [vmem:[%s11 + $0x8] sm:$0xff]
    %v786 = vmul.f32 %v776, %v784
    %v787 = vmul.f32 %v781, %v785
    %v788 = vld [vmem:[%s15] sm:$0xff]
    %v789 = vld [vmem:[%s15 + $0x8] sm:$0xff]
    %v790 = vld [vmem:[%s15 + $0x10] sm:$0xff]
    %v791 = vld [vmem:[%s15 + $0x18] sm:$0xff]
    %v792 = vld [vmem:[%s15 + $0x20] sm:$0xff]
    %v793 = vld [vmem:[%s15 + $0x28] sm:$0xff]
    %v794 = vld [vmem:[%s15 + $0x30] sm:$0xff]
    %v795 = vld [vmem:[%s15 + $0x38] sm:$0xff]
    %v796 = vld [vmem:[%s4] sm:$0x1]
    %v798 = vlaneseq
    %v799 = vshrl.u32 %v798, 7
    %v800 = vsub.s32 0, %v799
    %v801 = vrot.slane %v796, %v800
    %v803 = vmul.f32 %v369, %v801
    %v804 = vmul.f32 %v375, %v801
    %v805 = vmul.f32 %v803, %v408
    %v806 = vmul.f32 %v804, %v410
    %v808 = vsel %vm59, %v805, 0
    %v811 = vsel %vm59, %v806, 0
    %813 = vmatprep.subr.mxu0 0.0
    %814 = vmatpush1.msra.mxu0 %v788
    %815 = vmatprep.subr.mxu0 0.0
    %816 = vmatpush1.msra.mxu0 %v789
    %817 = vmatprep.subr.mxu0 0.0
    %818 = vmatpush1.msra.mxu0 %v790
    %819 = vmatprep.subr.mxu0 0.0
    %820 = vmatpush1.msra.mxu0 %v791
    %821 = vmatprep.subr.mxu0 0.0
    %822 = vmatpush1.msra.mxu0 %v792
    %823 = vmatprep.subr.mxu0 0.0
    %824 = vmatpush1.msra.mxu0 %v793
    %825 = vmatprep.subr.mxu0 0.0
    %826 = vmatpush1.msra.mxu0 %v794
    %827 = vmatprep.subr.mxu0 0.0
    %828 = vmatpush1.msra.mxu0 %v795
    %829 = vmatprep.subr.mxu0 0.0
    %830 = vmatpush1.msra.mxu0 0.0
    %831 = vmatprep.subr.mxu0 0.0
    %832 = vmatpush1.msra.mxu0 0.0
    %833 = vmatprep.subr.mxu0 0.0
    %834 = vmatpush1.msra.mxu0 0.0
    %835 = vmatprep.subr.mxu0 0.0
    %836 = vmatpush1.msra.mxu0 0.0
    %837 = vmatprep.subr.mxu0 0.0
    %838 = vmatpush1.msra.mxu0 0.0
    %839 = vmatprep.subr.mxu0 0.0
    %840 = vmatpush1.msra.mxu0 0.0
    %841 = vmatprep.subr.mxu0 0.0
    %842 = vmatpush1.msra.mxu0 0.0
    %843 = vmatprep.subr.mxu0 0.0
    %844 = vmatpush1.msra.mxu0 0.0
    %845 = vmatprep.subr.mxu0 0.0
    %846 = vmatpush1.msra.mxu0 0.0
    %847 = vmatprep.subr.mxu0 0.0
    %848 = vmatpush1.msra.mxu0 0.0
    %849 = vmatprep.subr.mxu0 0.0
    %850 = vmatpush1.msra.mxu0 0.0
    %851 = vmatprep.subr.mxu0 0.0
    %852 = vmatpush1.msra.mxu0 0.0
    %853 = vmatprep.subr.mxu0 0.0
    %854 = vmatpush1.msra.mxu0 0.0
    %855 = vmatprep.subr.mxu0 0.0
    %856 = vmatpush1.msra.mxu0 0.0
    %857 = vmatprep.subr.mxu0 0.0
    %858 = vmatpush1.msra.mxu0 0.0
    %859 = vmatprep.subr.mxu0 0.0
    %860 = vmatpush1.msra.mxu0 0.0
    %861 = vmatprep.subr.mxu0 0.0
    %862 = vmatpush1.msra.mxu0 0.0
    %863 = vmatprep.subr.mxu0 0.0
    %864 = vmatpush1.msra.mxu0 0.0
    %865 = vmatprep.subr.mxu0 0.0
    %866 = vmatpush1.msra.mxu0 0.0
    %867 = vmatprep.subr.mxu0 0.0
    %868 = vmatpush1.msra.mxu0 0.0
    %869 = vmatprep.subr.mxu0 0.0
    %870 = vmatpush1.msra.mxu0 0.0
    %871 = vmatprep.subr.mxu0 0.0
    %872 = vmatpush1.msra.mxu0 0.0
    %873 = vmatprep.subr.mxu0 0.0
    %874 = vmatpush1.msra.mxu0 0.0
    %875 = vmatprep.subr.mxu0 0.0
    %876 = vmatpush1.msra.mxu0 0.0
    %877 = vmatprep.mubr.f32.mxu0 0.0
    %878 = vmatmul.mubr.f32.gmra.mrb[0].mxu0 %v808
    %v879 = vpop.f32.mrb[0].mxu0
    %v880 = vadd.f32 0.0, %v879
    %v881 = vpop.f32.mrb[0].mxu0
    %882 = vmatprep.mubr.f32.mxu0 0.0
    %883 = vmatmul.mubr.f32.gmra.mrb[0].mxu0 %v811
    %v884 = vpop.f32.mrb[0].mxu0
    %v885 = vadd.f32 0.0, %v884
    %v886 = vpop.f32.mrb[0].mxu0
    %887 = vdwg.mxu0
    %v888 = vmul.f32 %v880, %v371
    %v889 = vmul.f32 %v885, %v377
    %v891 = vsel %vm59, %v786, 0
    %v894 = vsel %vm59, %v787, 0
    %896 = vmatprep.subr.mxu0 0.0
    %897 = vmatpush1.msra.mxu0 %v671
    %898 = vmatprep.subr.mxu0 0.0
    %899 = vmatpush1.msra.mxu0 %v672
    %900 = vmatprep.subr.mxu0 0.0
    %901 = vmatpush1.msra.mxu0 %v673
    %902 = vmatprep.subr.mxu0 0.0
    %903 = vmatpush1.msra.mxu0 %v674
    %904 = vmatprep.subr.mxu0 0.0
    %905 = vmatpush1.msra.mxu0 %v675
    %906 = vmatprep.subr.mxu0 0.0
    %907 = vmatpush1.msra.mxu0 %v676
    %908 = vmatprep.subr.mxu0 0.0
    %909 = vmatpush1.msra.mxu0 %v677
    %910 = vmatprep.subr.mxu0 0.0
    %911 = vmatpush1.msra.mxu0 %v678
    %912 = vmatprep.subr.mxu0 0.0
    %913 = vmatpush1.msra.mxu0 0.0
    %914 = vmatprep.subr.mxu0 0.0
    %915 = vmatpush1.msra.mxu0 0.0
    %916 = vmatprep.subr.mxu0 0.0
    %917 = vmatpush1.msra.mxu0 0.0
    %918 = vmatprep.subr.mxu0 0.0
    %919 = vmatpush1.msra.mxu0 0.0
    %920 = vmatprep.subr.mxu0 0.0
    %921 = vmatpush1.msra.mxu0 0.0
    %922 = vmatprep.subr.mxu0 0.0
    %923 = vmatpush1.msra.mxu0 0.0
    %924 = vmatprep.subr.mxu0 0.0
    %925 = vmatpush1.msra.mxu0 0.0
    %926 = vmatprep.subr.mxu0 0.0
    %927 = vmatpush1.msra.mxu0 0.0
    %928 = vmatprep.subr.mxu0 0.0
    %929 = vmatpush1.msra.mxu0 0.0
    %930 = vmatprep.subr.mxu0 0.0
    %931 = vmatpush1.msra.mxu0 0.0
    %932 = vmatprep.subr.mxu0 0.0
    %933 = vmatpush1.msra.mxu0 0.0
    %934 = vmatprep.subr.mxu0 0.0
    %935 = vmatpush1.msra.mxu0 0.0
    %936 = vmatprep.subr.mxu0 0.0
    %937 = vmatpush1.msra.mxu0 0.0
    %938 = vmatprep.subr.mxu0 0.0
    %939 = vmatpush1.msra.mxu0 0.0
    %940 = vmatprep.subr.mxu0 0.0
    %941 = vmatpush1.msra.mxu0 0.0
    %942 = vmatprep.subr.mxu0 0.0
    %943 = vmatpush1.msra.mxu0 0.0
    %944 = vmatprep.subr.mxu0 0.0
    %945 = vmatpush1.msra.mxu0 0.0
    %946 = vmatprep.subr.mxu0 0.0
    %947 = vmatpush1.msra.mxu0 0.0
    %948 = vmatprep.subr.mxu0 0.0
    %949 = vmatpush1.msra.mxu0 0.0
    %950 = vmatprep.subr.mxu0 0.0
    %951 = vmatpush1.msra.mxu0 0.0
    %952 = vmatprep.subr.mxu0 0.0
    %953 = vmatpush1.msra.mxu0 0.0
    %954 = vmatprep.subr.mxu0 0.0
    %955 = vmatpush1.msra.mxu0 0.0
    %956 = vmatprep.subr.mxu0 0.0
    %957 = vmatpush1.msra.mxu0 0.0
    %958 = vmatprep.subr.mxu0 0.0
    %959 = vmatpush1.msra.mxu0 0.0
    %960 = vmatprep.mubr.f32.mxu0 0.0
    %961 = vmatmul.mubr.f32.gmra.mrb[0].mxu0 %v891
    %v962 = vpop.f32.mrb[0].mxu0
    %v963 = vadd.f32 %v888, %v962
    %v964 = vpop.f32.mrb[0].mxu0
    %965 = vmatprep.mubr.f32.mxu0 0.0
    %966 = vmatmul.mubr.f32.gmra.mrb[0].mxu0 %v894
    %v967 = vpop.f32.mrb[0].mxu0
    %v968 = vadd.f32 %v889, %v967
    %v969 = vpop.f32.mrb[0].mxu0
    %970 = vdwg.mxu0
    %v971 = vmul.f32 %v963, 0.125
    %v972 = vmul.f32 %v968, 0.125
    %v974 = vsel %vm59, %v971, 0
    %v977 = vsel %vm59, %v972, 0
    %979 = vmatprep.subr.mxu0 0.0
    %980 = vmatpush1.msra.mxu0 %v788
    %981 = vmatprep.subr.mxu0 0.0
    %982 = vmatpush1.msra.mxu0 %v789
    %983 = vmatprep.subr.mxu0 0.0
    %984 = vmatpush1.msra.mxu0 %v790
    %985 = vmatprep.subr.mxu0 0.0
    %986 = vmatpush1.msra.mxu0 %v791
    %987 = vmatprep.subr.mxu0 0.0
    %988 = vmatpush1.msra.mxu0 %v792
    %989 = vmatprep.subr.mxu0 0.0
    %990 = vmatpush1.msra.mxu0 %v793
    %991 = vmatprep.subr.mxu0 0.0
    %992 = vmatpush1.msra.mxu0 %v794
    %993 = vmatprep.subr.mxu0 0.0
    %994 = vmatpush1.msra.mxu0 %v795
    %995 = vmatprep.subr.mxu0 0.0
    %996 = vmatpush1.msra.mxu0 0.0
    %997 = vmatprep.subr.mxu0 0.0
    %998 = vmatpush1.msra.mxu0 0.0
    %999 = vmatprep.subr.mxu0 0.0
    %1000 = vmatpush1.msra.mxu0 0.0
    %1001 = vmatprep.subr.mxu0 0.0
    %1002 = vmatpush1.msra.mxu0 0.0
    %1003 = vmatprep.subr.mxu0 0.0
    %1004 = vmatpush1.msra.mxu0 0.0
    %1005 = vmatprep.subr.mxu0 0.0
    %1006 = vmatpush1.msra.mxu0 0.0
    %1007 = vmatprep.subr.mxu0 0.0
    %1008 = vmatpush1.msra.mxu0 0.0
    %1009 = vmatprep.subr.mxu0 0.0
    %1010 = vmatpush1.msra.mxu0 0.0
    %1011 = vmatprep.subr.mxu0 0.0
    %1012 = vmatpush1.msra.mxu0 0.0
    %1013 = vmatprep.subr.mxu0 0.0
    %1014 = vmatpush1.msra.mxu0 0.0
    %1015 = vmatprep.subr.mxu0 0.0
    %1016 = vmatpush1.msra.mxu0 0.0
    %1017 = vmatprep.subr.mxu0 0.0
    %1018 = vmatpush1.msra.mxu0 0.0
    %1019 = vmatprep.subr.mxu0 0.0
    %1020 = vmatpush1.msra.mxu0 0.0
    %1021 = vmatprep.subr.mxu0 0.0
    %1022 = vmatpush1.msra.mxu0 0.0
    %1023 = vmatprep.subr.mxu0 0.0
    %1024 = vmatpush1.msra.mxu0 0.0
    %1025 = vmatprep.subr.mxu0 0.0
    %1026 = vmatpush1.msra.mxu0 0.0
    %1027 = vmatprep.subr.mxu0 0.0
    %1028 = vmatpush1.msra.mxu0 0.0
    %1029 = vmatprep.subr.mxu0 0.0
    %1030 = vmatpush1.msra.mxu0 0.0
    %1031 = vmatprep.subr.mxu0 0.0
    %1032 = vmatpush1.msra.mxu0 0.0
    %1033 = vmatprep.subr.mxu0 0.0
    %1034 = vmatpush1.msra.mxu0 0.0
    %1035 = vmatprep.subr.mxu0 0.0
    %1036 = vmatpush1.msra.mxu0 0.0
    %1037 = vmatprep.subr.mxu0 0.0
    %1038 = vmatpush1.msra.mxu0 0.0
    %1039 = vmatprep.subr.mxu0 0.0
    %1040 = vmatpush1.msra.mxu0 0.0
    %1041 = vmatprep.subr.mxu0 0.0
    %1042 = vmatpush1.msra.mxu0 0.0
    %1043 = vmatprep.mubr.f32.mxu0 0.0
    %1044 = vmatmul.mubr.f32.gmra.mrb[0].mxu0 %v974
    %v1045 = vpop.f32.mrb[0].mxu0
    %v1046 = vadd.f32 0.0, %v1045
    %v1047 = vpop.f32.mrb[0].mxu0
    %1048 = vmatprep.mubr.f32.mxu0 0.0
    %1049 = vmatmul.mubr.f32.gmra.mrb[0].mxu0 %v977
    %v1050 = vpop.f32.mrb[0].mxu0
    %v1051 = vadd.f32 0.0, %v1050
    %v1052 = vpop.f32.mrb[0].mxu0
    %1053 = vdwg.mxu0
    %v1054 = vsub.f32 %v971, %v1046
    %v1055 = vsub.f32 %v972, %v1051
    %v1056 = vmul.f32 %v1054, %v1054
    %v1057 = vmul.f32 %v1055, %v1055
    %v1058 = vld [vmem:[%s3] sm:$0x3]
    %v1060 = vsel %vm59, %v1056, 0
    %v1063 = vsel %vm59, %v1057, 0
    %1065 = vmatprep.subr.mxu0 0.0
    %1066 = vmatpush1.msra.mxu0 %v788
    %1067 = vmatprep.subr.mxu0 0.0
    %1068 = vmatpush1.msra.mxu0 %v789
    %1069 = vmatprep.subr.mxu0 0.0
    %1070 = vmatpush1.msra.mxu0 %v790
    %1071 = vmatprep.subr.mxu0 0.0
    %1072 = vmatpush1.msra.mxu0 %v791
    %1073 = vmatprep.subr.mxu0 0.0
    %1074 = vmatpush1.msra.mxu0 %v792
    %1075 = vmatprep.subr.mxu0 0.0
    %1076 = vmatpush1.msra.mxu0 %v793
    %1077 = vmatprep.subr.mxu0 0.0
    %1078 = vmatpush1.msra.mxu0 %v794
    %1079 = vmatprep.subr.mxu0 0.0
    %1080 = vmatpush1.msra.mxu0 %v795
    %1081 = vmatprep.subr.mxu0 0.0
    %1082 = vmatpush1.msra.mxu0 0.0
    %1083 = vmatprep.subr.mxu0 0.0
    %1084 = vmatpush1.msra.mxu0 0.0
    %1085 = vmatprep.subr.mxu0 0.0
    %1086 = vmatpush1.msra.mxu0 0.0
    %1087 = vmatprep.subr.mxu0 0.0
    %1088 = vmatpush1.msra.mxu0 0.0
    %1089 = vmatprep.subr.mxu0 0.0
    %1090 = vmatpush1.msra.mxu0 0.0
    %1091 = vmatprep.subr.mxu0 0.0
    %1092 = vmatpush1.msra.mxu0 0.0
    %1093 = vmatprep.subr.mxu0 0.0
    %1094 = vmatpush1.msra.mxu0 0.0
    %1095 = vmatprep.subr.mxu0 0.0
    %1096 = vmatpush1.msra.mxu0 0.0
    %1097 = vmatprep.subr.mxu0 0.0
    %1098 = vmatpush1.msra.mxu0 0.0
    %1099 = vmatprep.subr.mxu0 0.0
    %1100 = vmatpush1.msra.mxu0 0.0
    %1101 = vmatprep.subr.mxu0 0.0
    %1102 = vmatpush1.msra.mxu0 0.0
    %1103 = vmatprep.subr.mxu0 0.0
    %1104 = vmatpush1.msra.mxu0 0.0
    %1105 = vmatprep.subr.mxu0 0.0
    %1106 = vmatpush1.msra.mxu0 0.0
    %1107 = vmatprep.subr.mxu0 0.0
    %1108 = vmatpush1.msra.mxu0 0.0
    %1109 = vmatprep.subr.mxu0 0.0
    %1110 = vmatpush1.msra.mxu0 0.0
    %1111 = vmatprep.subr.mxu0 0.0
    %1112 = vmatpush1.msra.mxu0 0.0
    %1113 = vmatprep.subr.mxu0 0.0
    %1114 = vmatpush1.msra.mxu0 0.0
    %1115 = vmatprep.subr.mxu0 0.0
    %1116 = vmatpush1.msra.mxu0 0.0
    %1117 = vmatprep.subr.mxu0 0.0
    %1118 = vmatpush1.msra.mxu0 0.0
    %1119 = vmatprep.subr.mxu0 0.0
    %1120 = vmatpush1.msra.mxu0 0.0
    %1121 = vmatprep.subr.mxu0 0.0
    %1122 = vmatpush1.msra.mxu0 0.0
    %1123 = vmatprep.subr.mxu0 0.0
    %1124 = vmatpush1.msra.mxu0 0.0
    %1125 = vmatprep.subr.mxu0 0.0
    %1126 = vmatpush1.msra.mxu0 0.0
    %1127 = vmatprep.subr.mxu0 0.0
    %1128 = vmatpush1.msra.mxu0 0.0
    %1129 = vmatprep.mubr.f32.mxu0 0.0
    %1130 = vmatmul.mubr.f32.gmra.mrb[0].mxu0 %v1060
    %v1131 = vpop.f32.mrb[0].mxu0
    %v1132 = vadd.f32 1e-05, %v1131
    %v1133 = vpop.f32.mrb[0].mxu0
    %1134 = vmatprep.mubr.f32.mxu0 0.0
    %1135 = vmatmul.mubr.f32.gmra.mrb[0].mxu0 %v1063
    %v1136 = vpop.f32.mrb[0].mxu0
    %v1137 = vadd.f32 1e-05, %v1136
    %v1138 = vpop.f32.mrb[0].mxu0
    %1139 = vdwg.mxu0
    %v1140 = vrsqrt.pop %v1132
    %v1141 = vrsqrt.pop %v1137
    %v1142 = vmul.f32 %v1054, %v1140
    %v1143 = vmul.f32 %v1055, %v1141
    %v1144 = vlaneseq
    %v1145 = vshrl.u32 %v1144, 7
    %v1146 = vsub.s32 0, %v1145
    %v1147 = vrot.slane %v1058, %v1146
    %v1148 = vmul.f32 %v1142, %v1147
    %v1149 = vmul.f32 %v1143, %v1147
    %v1150 = vlaneseq
    %v1151 = vshrl.u32 %v1150, 7
    %v1152 = vsub.s32 1, %v1151
    %v1153 = vrot.slane %v1058, %v1152
    %v1154 = vadd.f32 %v1148, %v1153
    %v1155 = vadd.f32 %v1149, %v1153
    %1158 = vrot.lane.b32.xlu0 %v391, 64
    %v1159 = vpop.permute.xlu0 %1158
    %1160 = vrot.lane.b32.xlu0 %v392, 64
    %v1161 = vpop.permute.xlu0 %1160
    %v1164 = vmul.f32 %v1154, %v1159
    %v1165 = vmul.f32 %v1155, %v1161
    %v1166 = vld [vmem:[%s7] sm:$0xff]
    %v1167 = vld [vmem:[%s7 + $0x8] sm:$0xff]
    %v1168 = vld [vmem:[%s7 + $0x10] sm:$0xff]
    %v1169 = vld [vmem:[%s7 + $0x18] sm:$0xff]
    %v1170 = vld [vmem:[%s7 + $0x20] sm:$0xff]
    %v1171 = vld [vmem:[%s7 + $0x28] sm:$0xff]
    %v1172 = vld [vmem:[%s7 + $0x30] sm:$0xff]
    %v1173 = vld [vmem:[%s7 + $0x38] sm:$0xff]
    %v1175 = vsel %vm59, %v1164, 0
    %v1178 = vsel %vm59, %v1165, 0
    %1180 = vmatprep.subr.mxu0 0.0
    %1181 = vmatpush1.msra.mxu0 %v1166
    %1182 = vmatprep.subr.mxu0 0.0
    %1183 = vmatpush1.msra.mxu0 %v1167
    %1184 = vmatprep.subr.mxu0 0.0
    %1185 = vmatpush1.msra.mxu0 %v1168
    %1186 = vmatprep.subr.mxu0 0.0
    %1187 = vmatpush1.msra.mxu0 %v1169
    %1188 = vmatprep.subr.mxu0 0.0
    %1189 = vmatpush1.msra.mxu0 %v1170
    %1190 = vmatprep.subr.mxu0 0.0
    %1191 = vmatpush1.msra.mxu0 %v1171
    %1192 = vmatprep.subr.mxu0 0.0
    %1193 = vmatpush1.msra.mxu0 %v1172
    %1194 = vmatprep.subr.mxu0 0.0
    %1195 = vmatpush1.msra.mxu0 %v1173
    %1196 = vmatprep.subr.mxu0 0.0
    %1197 = vmatpush1.msra.mxu0 0.0
    %1198 = vmatprep.subr.mxu0 0.0
    %1199 = vmatpush1.msra.mxu0 0.0
    %1200 = vmatprep.subr.mxu0 0.0
    %1201 = vmatpush1.msra.mxu0 0.0
    %1202 = vmatprep.subr.mxu0 0.0
    %1203 = vmatpush1.msra.mxu0 0.0
    %1204 = vmatprep.subr.mxu0 0.0
    %1205 = vmatpush1.msra.mxu0 0.0
    %1206 = vmatprep.subr.mxu0 0.0
    %1207 = vmatpush1.msra.mxu0 0.0
    %1208 = vmatprep.subr.mxu0 0.0
    %1209 = vmatpush1.msra.mxu0 0.0
    %1210 = vmatprep.subr.mxu0 0.0
    %1211 = vmatpush1.msra.mxu0 0.0
    %1212 = vmatprep.subr.mxu0 0.0
    %1213 = vmatpush1.msra.mxu0 0.0
    %1214 = vmatprep.subr.mxu0 0.0
    %1215 = vmatpush1.msra.mxu0 0.0
    %1216 = vmatprep.subr.mxu0 0.0
    %1217 = vmatpush1.msra.mxu0 0.0
    %1218 = vmatprep.subr.mxu0 0.0
    %1219 = vmatpush1.msra.mxu0 0.0
    %1220 = vmatprep.subr.mxu0 0.0
    %1221 = vmatpush1.msra.mxu0 0.0
    %1222 = vmatprep.subr.mxu0 0.0
    %1223 = vmatpush1.msra.mxu0 0.0
    %1224 = vmatprep.subr.mxu0 0.0
    %1225 = vmatpush1.msra.mxu0 0.0
    %1226 = vmatprep.subr.mxu0 0.0
    %1227 = vmatpush1.msra.mxu0 0.0
    %1228 = vmatprep.subr.mxu0 0.0
    %1229 = vmatpush1.msra.mxu0 0.0
    %1230 = vmatprep.subr.mxu0 0.0
    %1231 = vmatpush1.msra.mxu0 0.0
    %1232 = vmatprep.subr.mxu0 0.0
    %1233 = vmatpush1.msra.mxu0 0.0
    %1234 = vmatprep.subr.mxu0 0.0
    %1235 = vmatpush1.msra.mxu0 0.0
    %1236 = vmatprep.subr.mxu0 0.0
    %1237 = vmatpush1.msra.mxu0 0.0
    %1238 = vmatprep.subr.mxu0 0.0
    %1239 = vmatpush1.msra.mxu0 0.0
    %1240 = vmatprep.subr.mxu0 0.0
    %1241 = vmatpush1.msra.mxu0 0.0
    %1242 = vmatprep.subr.mxu0 0.0
    %1243 = vmatpush1.msra.mxu0 0.0
    %1244 = vmatprep.mubr.f32.mxu0 0.0
    %1245 = vmatmul.mubr.f32.gmra.mrb[0].mxu0 %v1175
    %v1246 = vpop.f32.mrb[0].mxu0
    %v1247 = vadd.f32 0.0, %v1246
    %v1248 = vpop.f32.mrb[0].mxu0
    %1249 = vmatprep.mubr.f32.mxu0 0.0
    %1250 = vmatmul.mubr.f32.gmra.mrb[0].mxu0 %v1178
    %v1251 = vpop.f32.mrb[0].mxu0
    %v1252 = vadd.f32 0.0, %v1251
    %v1253 = vpop.f32.mrb[0].mxu0
    %1254 = vdwg.mxu0
    %v1255 = vadd.f32 %v54, %v1247
    %v1256 = vadd.f32 %v55, %v1252
    %v1257 = vld [vmem:[%s2] sm:$0x3]
    %v1258 = vsel %vm59, %v1255, 0.0
    %1259 = vadd.xlane.f32.xlu0 %v1258
    %v1260 = vpop.xlane.xlu0 %1259
    %v1261 = vsel %vm59, %v1256, 0.0
    %1262 = vadd.xlane.f32.xlu0 %v1261
    %v1263 = vpop.xlane.xlu0 %1262
    %v1264 = vmul.f32 %v1260, %v66
    %v1265 = vmul.f32 %v1263, %v66
    %v1266 = vsub.f32 %v1255, %v1264
    %v1267 = vsub.f32 %v1256, %v1265
    %v1268 = vmul.f32 %v1266, %v1266
    %v1269 = vmul.f32 %v1267, %v1267
    %v1270 = vsel %vm59, %v1268, 0.0
    %1271 = vadd.xlane.f32.xlu0 %v1270
    %v1272 = vpop.xlane.xlu0 %1271
    %v1273 = vsel %vm59, %v1269, 0.0
    %1274 = vadd.xlane.f32.xlu0 %v1273
    %v1275 = vpop.xlane.xlu0 %1274
    %v1276 = vmul.f32 %v1272, %v66
    %v1277 = vmul.f32 %v1275, %v66
    %v1278 = vadd.f32 %v1276, 1e-05
    %v1279 = vadd.f32 %v1277, 1e-05
    %v1280 = vrsqrt.pop %v1278
    %v1281 = vrsqrt.pop %v1279
    %v1282 = vmul.f32 %v1266, %v1280
    %v1283 = vmul.f32 %v1267, %v1281
    %v1284 = vlaneseq
    %v1285 = vshrl.u32 %v1284, 7
    %v1286 = vsub.s32 0, %v1285
    %v1287 = vrot.slane %v1257, %v1286
    %v1288 = vmul.f32 %v1282, %v1287
    %v1289 = vmul.f32 %v1283, %v1287
    %v1290 = vlaneseq
    %v1291 = vshrl.u32 %v1290, 7
    %v1292 = vsub.s32 1, %v1291
    %v1293 = vrot.slane %v1257, %v1292
    %v1294 = vadd.f32 %v1288, %v1293
    %v1295 = vadd.f32 %v1289, %v1293
    %1296 = vmatprep.subr.mxu0 0.0
    %1297 = vmatpush1.msra.mxu0 %v1294
    %1298 = vmatprep.subr.mxu0 0.0
    %1299 = vmatpush1.msra.mxu0 %v1295
    %1300 = vmatprep.subr.mxu0 0.0
    %1301 = vmatpush1.msra.mxu0 0.0
    %1302 = vmatprep.subr.mxu0 0.0
    %1303 = vmatpush1.msra.mxu0 0.0
    %1304 = vmatprep.subr.mxu0 0.0
    %1305 = vmatpush1.msra.mxu0 0.0
    %1306 = vmatprep.subr.mxu0 0.0
    %1307 = vmatpush1.msra.mxu0 0.0
    %1308 = vmatprep.subr.mxu0 0.0
    %1309 = vmatpush1.msra.mxu0 0.0
    %1310 = vmatprep.subr.mxu0 0.0
    %1311 = vmatpush1.msra.mxu0 0.0
    %1312 = vmatprep.subr.mxu0 0.0
    %1313 = vmatpush1.msra.mxu0 0.0
    %1314 = vmatprep.subr.mxu0 0.0
    %1315 = vmatpush1.msra.mxu0 0.0
    %1316 = vmatprep.subr.mxu0 0.0
    %1317 = vmatpush1.msra.mxu0 0.0
    %1318 = vmatprep.subr.mxu0 0.0
    %1319 = vmatpush1.msra.mxu0 0.0
    %1320 = vmatprep.subr.mxu0 0.0
    %1321 = vmatpush1.msra.mxu0 0.0
    %1322 = vmatprep.subr.mxu0 0.0
    %1323 = vmatpush1.msra.mxu0 0.0
    %1324 = vmatprep.subr.mxu0 0.0
    %1325 = vmatpush1.msra.mxu0 0.0
    %1326 = vmatprep.subr.mxu0 0.0
    %1327 = vmatpush1.msra.mxu0 0.0
    %1328 = vmatprep.subr.mxu0 0.0
    %1329 = vmatpush1.msra.mxu0 0.0
    %1330 = vmatprep.subr.mxu0 0.0
    %1331 = vmatpush1.msra.mxu0 0.0
    %1332 = vmatprep.subr.mxu0 0.0
    %1333 = vmatpush1.msra.mxu0 0.0
    %1334 = vmatprep.subr.mxu0 0.0
    %1335 = vmatpush1.msra.mxu0 0.0
    %1336 = vmatprep.subr.mxu0 0.0
    %1337 = vmatpush1.msra.mxu0 0.0
    %1338 = vmatprep.subr.mxu0 0.0
    %1339 = vmatpush1.msra.mxu0 0.0
    %1340 = vmatprep.subr.mxu0 0.0
    %1341 = vmatpush1.msra.mxu0 0.0
    %1342 = vmatprep.subr.mxu0 0.0
    %1343 = vmatpush1.msra.mxu0 0.0
    %1344 = vmatprep.subr.mxu0 0.0
    %1345 = vmatpush1.msra.mxu0 0.0
    %1346 = vmatprep.subr.mxu0 0.0
    %1347 = vmatpush1.msra.mxu0 0.0
    %1348 = vmatprep.subr.mxu0 0.0
    %1349 = vmatpush1.msra.mxu0 0.0
    %1350 = vmatprep.subr.mxu0 0.0
    %1351 = vmatpush1.msra.mxu0 0.0
    %1352 = vmatprep.subr.mxu0 0.0
    %1353 = vmatpush1.msra.mxu0 0.0
    %1354 = vmatprep.subr.mxu0 0.0
    %1355 = vmatpush1.msra.mxu0 0.0
    %1356 = vmatprep.subr.mxu0 0.0
    %1357 = vmatpush1.msra.mxu0 0.0
    %1358 = vmatprep.subr.mxu0 0.0
    %1359 = vmatpush1.msra.mxu0 0.0
    %1360 = vmatprep.mubr.f32.mxu0 0.0
    %1361 = vmatmul.mubr.f32.gmra.mrb[0].mxu0 %v101
    %v1362 = vpop.f32.mrb[0].mxu0
    %v1363 = vadd.f32 0.0, %v1362
    %v1364 = vpop.f32.mrb[0].mxu0
    %1365 = vmatprep.mubr.f32.mxu0 0.0
    %1366 = vmatmul.mubr.f32.gmra.mrb[0].mxu0 %v104
    %v1367 = vpop.f32.mrb[0].mxu0
    %v1368 = vadd.f32 0.0, %v1367
    %v1369 = vpop.f32.mrb[0].mxu0
    %1370 = vdwg.mxu0
    %v1371 = vld [vmem:[%s8] sm:$0xff]
    %v1372 = vld [vmem:[%s8 + $0x8] sm:$0xff]
    %v1373 = vld [vmem:[%s8 + $0x10] sm:$0xff]
    %v1374 = vld [vmem:[%s8 + $0x18] sm:$0xff]
    %v1375 = vld [vmem:[%s8 + $0x20] sm:$0xff]
    %v1376 = vld [vmem:[%s8 + $0x28] sm:$0xff]
    %v1377 = vld [vmem:[%s8 + $0x30] sm:$0xff]
    %v1378 = vld [vmem:[%s8 + $0x38] sm:$0xff]
    %v1379 = vld [vmem:[%s8 + $0x40] sm:$0xff]
    %v1380 = vld [vmem:[%s8 + $0x48] sm:$0xff]
    %v1381 = vld [vmem:[%s8 + $0x50] sm:$0xff]
    %v1382 = vld [vmem:[%s8 + $0x58] sm:$0xff]
    %v1383 = vld [vmem:[%s8 + $0x60] sm:$0xff]
    %v1384 = vld [vmem:[%s8 + $0x68] sm:$0xff]
    %v1385 = vld [vmem:[%s8 + $0x70] sm:$0xff]
    %v1386 = vld [vmem:[%s8 + $0x78] sm:$0xff]
    %v1387 = vld [vmem:[%s8 + $0x80] sm:$0xff]
    %v1388 = vld [vmem:[%s8 + $0x88] sm:$0xff]
    %v1389 = vld [vmem:[%s8 + $0x90] sm:$0xff]
    %v1390 = vld [vmem:[%s8 + $0x98] sm:$0xff]
    %v1391 = vld [vmem:[%s8 + $0xa0] sm:$0xff]
    %v1392 = vld [vmem:[%s8 + $0xa8] sm:$0xff]
    %v1393 = vld [vmem:[%s8 + $0xb0] sm:$0xff]
    %v1394 = vld [vmem:[%s8 + $0xb8] sm:$0xff]
    %v1395 = vld [vmem:[%s8 + $0xc0] sm:$0xff]
    %v1396 = vld [vmem:[%s8 + $0xc8] sm:$0xff]
    %v1397 = vld [vmem:[%s8 + $0xd0] sm:$0xff]
    %v1398 = vld [vmem:[%s8 + $0xd8] sm:$0xff]
    %v1399 = vld [vmem:[%s8 + $0xe0] sm:$0xff]
    %v1400 = vld [vmem:[%s8 + $0xe8] sm:$0xff]
    %v1401 = vld [vmem:[%s8 + $0xf0] sm:$0xff]
    %v1402 = vld [vmem:[%s8 + $0xf8] sm:$0xff]
    %v1404 = vsel %vm59, %v1363, 0
    %v1407 = vsel %vm59, %v1368, 0
    %1409 = vmatprep.subr.mxu0 %v1388
    %1410 = vmatpush1.msra.mxu0 %v1387
    %1411 = vmatprep.subr.mxu0 %v1390
    %1412 = vmatpush1.msra.mxu0 %v1389
    %1413 = vmatprep.subr.mxu0 %v1392
    %1414 = vmatpush1.msra.mxu0 %v1391
    %1415 = vmatprep.subr.mxu0 %v1394
    %1416 = vmatpush1.msra.mxu0 %v1393
    %1417 = vmatprep.subr.mxu0 %v1396
    %1418 = vmatpush1.msra.mxu0 %v1395
    %1419 = vmatprep.subr.mxu0 %v1398
    %1420 = vmatpush1.msra.mxu0 %v1397
    %1421 = vmatprep.subr.mxu0 %v1400
    %1422 = vmatpush1.msra.mxu0 %v1399
    %1423 = vmatprep.subr.mxu0 %v1402
    %1424 = vmatpush1.msra.mxu0 %v1401
    %1425 = vmatprep.subr.mxu0 0.0
    %1426 = vmatpush1.msra.mxu0 0.0
    %1427 = vmatprep.subr.mxu0 0.0
    %1428 = vmatpush1.msra.mxu0 0.0
    %1429 = vmatprep.subr.mxu0 0.0
    %1430 = vmatpush1.msra.mxu0 0.0
    %1431 = vmatprep.subr.mxu0 0.0
    %1432 = vmatpush1.msra.mxu0 0.0
    %1433 = vmatprep.subr.mxu0 0.0
    %1434 = vmatpush1.msra.mxu0 0.0
    %1435 = vmatprep.subr.mxu0 0.0
    %1436 = vmatpush1.msra.mxu0 0.0
    %1437 = vmatprep.subr.mxu0 0.0
    %1438 = vmatpush1.msra.mxu0 0.0
    %1439 = vmatprep.subr.mxu0 0.0
    %1440 = vmatpush1.msra.mxu0 0.0
    %1441 = vmatprep.subr.mxu0 0.0
    %1442 = vmatpush1.msra.mxu0 0.0
    %1443 = vmatprep.subr.mxu0 0.0
    %1444 = vmatpush1.msra.mxu0 0.0
    %1445 = vmatprep.subr.mxu0 0.0
    %1446 = vmatpush1.msra.mxu0 0.0
    %1447 = vmatprep.subr.mxu0 0.0
    %1448 = vmatpush1.msra.mxu0 0.0
    %1449 = vmatprep.subr.mxu0 0.0
    %1450 = vmatpush1.msra.mxu0 0.0
    %1451 = vmatprep.subr.mxu0 0.0
    %1452 = vmatpush1.msra.mxu0 0.0
    %1453 = vmatprep.subr.mxu0 0.0
    %1454 = vmatpush1.msra.mxu0 0.0
    %1455 = vmatprep.subr.mxu0 0.0
    %1456 = vmatpush1.msra.mxu0 0.0
    %1457 = vmatprep.subr.mxu0 0.0
    %1458 = vmatpush1.msra.mxu0 0.0
    %1459 = vmatprep.subr.mxu0 0.0
    %1460 = vmatpush1.msra.mxu0 0.0
    %1461 = vmatprep.subr.mxu0 0.0
    %1462 = vmatpush1.msra.mxu0 0.0
    %1463 = vmatprep.subr.mxu0 0.0
    %1464 = vmatpush1.msra.mxu0 0.0
    %1465 = vmatprep.subr.mxu0 0.0
    %1466 = vmatpush1.msra.mxu0 0.0
    %1467 = vmatprep.subr.mxu0 0.0
    %1468 = vmatpush1.msra.mxu0 0.0
    %1469 = vmatprep.subr.mxu0 0.0
    %1470 = vmatpush1.msra.mxu0 0.0
    %1471 = vmatprep.subr.mxu0 0.0
    %1472 = vmatpush1.msra.mxu0 0.0
    %1473 = vmatprep.mubr.f32.mxu0 0.0
    %1474 = vmatmul.mubr.f32.gmra.mrb[0].mxu0 %v1404
    %v1475 = vpop.f32.mrb[0].mxu0
    %v1476 = vadd.f32 0.0, %v1475
    %v1477 = vpop.f32.mrb[0].mxu0
    %v1478 = vadd.f32 0.0, %v1477
    %1479 = vmatprep.mubr.f32.mxu0 0.0
    %1480 = vmatmul.mubr.f32.gmra.mrb[0].mxu0 %v1407
    %v1481 = vpop.f32.mrb[0].mxu0
    %v1482 = vadd.f32 0.0, %v1481
    %v1483 = vpop.f32.mrb[0].mxu0
    %v1484 = vadd.f32 0.0, %v1483
    %1485 = vdwg.mxu0
    %v1487 = vsel %vm59, %v1294, 0
    %v1490 = vsel %vm59, %v1295, 0
    %1492 = vmatprep.subr.mxu0 %v1372
    %1493 = vmatpush1.msra.mxu0 %v1371
    %1494 = vmatprep.subr.mxu0 %v1374
    %1495 = vmatpush1.msra.mxu0 %v1373
    %1496 = vmatprep.subr.mxu0 %v1376
    %1497 = vmatpush1.msra.mxu0 %v1375
    %1498 = vmatprep.subr.mxu0 %v1378
    %1499 = vmatpush1.msra.mxu0 %v1377
    %1500 = vmatprep.subr.mxu0 %v1380
    %1501 = vmatpush1.msra.mxu0 %v1379
    %1502 = vmatprep.subr.mxu0 %v1382
    %1503 = vmatpush1.msra.mxu0 %v1381
    %1504 = vmatprep.subr.mxu0 %v1384
    %1505 = vmatpush1.msra.mxu0 %v1383
    %1506 = vmatprep.subr.mxu0 %v1386
    %1507 = vmatpush1.msra.mxu0 %v1385
    %1508 = vmatprep.subr.mxu0 0.0
    %1509 = vmatpush1.msra.mxu0 0.0
    %1510 = vmatprep.subr.mxu0 0.0
    %1511 = vmatpush1.msra.mxu0 0.0
    %1512 = vmatprep.subr.mxu0 0.0
    %1513 = vmatpush1.msra.mxu0 0.0
    %1514 = vmatprep.subr.mxu0 0.0
    %1515 = vmatpush1.msra.mxu0 0.0
    %1516 = vmatprep.subr.mxu0 0.0
    %1517 = vmatpush1.msra.mxu0 0.0
    %1518 = vmatprep.subr.mxu0 0.0
    %1519 = vmatpush1.msra.mxu0 0.0
    %1520 = vmatprep.subr.mxu0 0.0
    %1521 = vmatpush1.msra.mxu0 0.0
    %1522 = vmatprep.subr.mxu0 0.0
    %1523 = vmatpush1.msra.mxu0 0.0
    %1524 = vmatprep.subr.mxu0 0.0
    %1525 = vmatpush1.msra.mxu0 0.0
    %1526 = vmatprep.subr.mxu0 0.0
    %1527 = vmatpush1.msra.mxu0 0.0
    %1528 = vmatprep.subr.mxu0 0.0
    %1529 = vmatpush1.msra.mxu0 0.0
    %1530 = vmatprep.subr.mxu0 0.0
    %1531 = vmatpush1.msra.mxu0 0.0
    %1532 = vmatprep.subr.mxu0 0.0
    %1533 = vmatpush1.msra.mxu0 0.0
    %1534 = vmatprep.subr.mxu0 0.0
    %1535 = vmatpush1.msra.mxu0 0.0
    %1536 = vmatprep.subr.mxu0 0.0
    %1537 = vmatpush1.msra.mxu0 0.0
    %1538 = vmatprep.subr.mxu0 0.0
    %1539 = vmatpush1.msra.mxu0 0.0
    %1540 = vmatprep.subr.mxu0 0.0
    %1541 = vmatpush1.msra.mxu0 0.0
    %1542 = vmatprep.subr.mxu0 0.0
    %1543 = vmatpush1.msra.mxu0 0.0
    %1544 = vmatprep.subr.mxu0 0.0
    %1545 = vmatpush1.msra.mxu0 0.0
    %1546 = vmatprep.subr.mxu0 0.0
    %1547 = vmatpush1.msra.mxu0 0.0
    %1548 = vmatprep.subr.mxu0 0.0
    %1549 = vmatpush1.msra.mxu0 0.0
    %1550 = vmatprep.subr.mxu0 0.0
    %1551 = vmatpush1.msra.mxu0 0.0
    %1552 = vmatprep.subr.mxu0 0.0
    %1553 = vmatpush1.msra.mxu0 0.0
    %1554 = vmatprep.subr.mxu0 0.0
    %1555 = vmatpush1.msra.mxu0 0.0
    %1556 = vmatprep.mubr.f32.mxu0 0.0
    %1557 = vmatmul.mubr.f32.gmra.mrb[0].mxu0 %v1487
    %v1558 = vpop.f32.mrb[0].mxu0
    %v1559 = vadd.f32 %v1476, %v1558
    %v1560 = vpop.f32.mrb[0].mxu0
    %v1561 = vadd.f32 %v1478, %v1560
    %1562 = vmatprep.mubr.f32.mxu0 0.0
    %1563 = vmatmul.mubr.f32.gmra.mrb[0].mxu0 %v1490
    %v1564 = vpop.f32.mrb[0].mxu0
    %v1565 = vadd.f32 %v1482, %v1564
    %v1566 = vpop.f32.mrb[0].mxu0
    %v1567 = vadd.f32 %v1484, %v1566
    %1568 = vdwg.mxu0
    %v1569 = vmax.f32 %v1559, 0.0
    %v1570 = vmax.f32 %v1565, 0.0
    %v1571 = vmul.f32 %v1569, %v1569
    %v1572 = vmul.f32 %v1570, %v1570
    %v1573 = vxor.u32 %v1561, 2147483648
    %v1574 = vxor.u32 %v1567, 2147483648
    %v1575 = vmul.f32 %v1573, 1.442695
    %v1576 = vpow.pop %v1575
    %v1577 = vmul.f32 %v1574, 1.442695
    %v1578 = vpow.pop %v1577
    %v1579 = vadd.f32 %v1576, 1.0
    %v1580 = vadd.f32 %v1578, 1.0
    %v1581 = vrcp.pop %v1579
    %v1582 = vmul.f32 1.0, %v1581
    %v1583 = vrcp.pop %v1580
    %v1584 = vmul.f32 1.0, %v1583
    %v1585 = vld [vmem:[%s9] sm:$0xff]
    %v1586 = vld [vmem:[%s9 + $0x8] sm:$0xff]
    %v1587 = vld [vmem:[%s9 + $0x10] sm:$0xff]
    %v1588 = vld [vmem:[%s9 + $0x18] sm:$0xff]
    %v1589 = vld [vmem:[%s9 + $0x20] sm:$0xff]
    %v1590 = vld [vmem:[%s9 + $0x28] sm:$0xff]
    %v1591 = vld [vmem:[%s9 + $0x30] sm:$0xff]
    %v1592 = vld [vmem:[%s9 + $0x38] sm:$0xff]
    %v1593 = vld [vmem:[%s9 + $0x40] sm:$0xff]
    %v1594 = vld [vmem:[%s9 + $0x48] sm:$0xff]
    %v1595 = vld [vmem:[%s9 + $0x50] sm:$0xff]
    %v1596 = vld [vmem:[%s9 + $0x58] sm:$0xff]
    %v1597 = vld [vmem:[%s9 + $0x60] sm:$0xff]
    %v1598 = vld [vmem:[%s9 + $0x68] sm:$0xff]
    %v1599 = vld [vmem:[%s9 + $0x70] sm:$0xff]
    %v1600 = vld [vmem:[%s9 + $0x78] sm:$0xff]
    %1601 = vmatprep.subr.mxu0 0.0
    %1602 = vmatpush1.msra.mxu0 %v1585
    %1603 = vmatprep.subr.mxu0 0.0
    %1604 = vmatpush1.msra.mxu0 %v1586
    %1605 = vmatprep.subr.mxu0 0.0
    %1606 = vmatpush1.msra.mxu0 %v1587
    %1607 = vmatprep.subr.mxu0 0.0
    %1608 = vmatpush1.msra.mxu0 %v1588
    %1609 = vmatprep.subr.mxu0 0.0
    %1610 = vmatpush1.msra.mxu0 %v1589
    %1611 = vmatprep.subr.mxu0 0.0
    %1612 = vmatpush1.msra.mxu0 %v1590
    %1613 = vmatprep.subr.mxu0 0.0
    %1614 = vmatpush1.msra.mxu0 %v1591
    %1615 = vmatprep.subr.mxu0 0.0
    %1616 = vmatpush1.msra.mxu0 %v1592
    %1617 = vmatprep.subr.mxu0 0.0
    %1618 = vmatpush1.msra.mxu0 %v1593
    %1619 = vmatprep.subr.mxu0 0.0
    %1620 = vmatpush1.msra.mxu0 %v1594
    %1621 = vmatprep.subr.mxu0 0.0
    %1622 = vmatpush1.msra.mxu0 %v1595
    %1623 = vmatprep.subr.mxu0 0.0
    %1624 = vmatpush1.msra.mxu0 %v1596
    %1625 = vmatprep.subr.mxu0 0.0
    %1626 = vmatpush1.msra.mxu0 %v1597
    %1627 = vmatprep.subr.mxu0 0.0
    %1628 = vmatpush1.msra.mxu0 %v1598
    %1629 = vmatprep.subr.mxu0 0.0
    %1630 = vmatpush1.msra.mxu0 %v1599
    %1631 = vmatprep.subr.mxu0 0.0
    %1632 = vmatpush1.msra.mxu0 %v1600
    %1633 = vmatprep.subr.mxu0 0.0
    %1634 = vmatpush1.msra.mxu0 0.0
    %1635 = vmatprep.subr.mxu0 0.0
    %1636 = vmatpush1.msra.mxu0 0.0
    %1637 = vmatprep.subr.mxu0 0.0
    %1638 = vmatpush1.msra.mxu0 0.0
    %1639 = vmatprep.subr.mxu0 0.0
    %1640 = vmatpush1.msra.mxu0 0.0
    %1641 = vmatprep.subr.mxu0 0.0
    %1642 = vmatpush1.msra.mxu0 0.0
    %1643 = vmatprep.subr.mxu0 0.0
    %1644 = vmatpush1.msra.mxu0 0.0
    %1645 = vmatprep.subr.mxu0 0.0
    %1646 = vmatpush1.msra.mxu0 0.0
    %1647 = vmatprep.subr.mxu0 0.0
    %1648 = vmatpush1.msra.mxu0 0.0
    %1649 = vmatprep.subr.mxu0 0.0
    %1650 = vmatpush1.msra.mxu0 0.0
    %1651 = vmatprep.subr.mxu0 0.0
    %1652 = vmatpush1.msra.mxu0 0.0
    %1653 = vmatprep.subr.mxu0 0.0
    %1654 = vmatpush1.msra.mxu0 0.0
    %1655 = vmatprep.subr.mxu0 0.0
    %1656 = vmatpush1.msra.mxu0 0.0
    %1657 = vmatprep.subr.mxu0 0.0
    %1658 = vmatpush1.msra.mxu0 0.0
    %1659 = vmatprep.subr.mxu0 0.0
    %1660 = vmatpush1.msra.mxu0 0.0
    %1661 = vmatprep.subr.mxu0 0.0
    %1662 = vmatpush1.msra.mxu0 0.0
    %1663 = vmatprep.subr.mxu0 0.0
    %1664 = vmatpush1.msra.mxu0 0.0
    %1665 = vmatprep.mubr.f32.mxu0 0.0
    %1666 = vmatmul.mubr.f32.gmra.mrb[0].mxu0 %v1571
    %v1667 = vpop.f32.mrb[0].mxu0
    %v1668 = vadd.f32 0.0, %v1667
    %v1669 = vpop.f32.mrb[0].mxu0
    %1670 = vmatprep.mubr.f32.mxu0 0.0
    %1671 = vmatmul.mubr.f32.gmra.mrb[0].mxu0 %v1572
    %v1672 = vpop.f32.mrb[0].mxu0
    %v1673 = vadd.f32 0.0, %v1672
    %v1674 = vpop.f32.mrb[0].mxu0
    %1675 = vdwg.mxu0
    %v1676 = vmul.f32 %v1582, %v1668
    %v1677 = vmul.f32 %v1584, %v1673
    %v1678 = vadd.f32 %v1255, %v1676
    %v1679 = vadd.f32 %v1256, %v1677
    %1680 = vst.msk [vmem:[#allocation2] sm:$0xff] %vm59, %v1678
    %1681 = vst.msk [vmem:[#allocation2 + $0x8] sm:$0xff] %vm59, %v1679
    // Predicated region
    $region66: #{block_forward_pallas.1} parent=1 // pred_check
      _
    $region67: #{block_forward_pallas.1} parent=1 // pred_check_branch
      %1683 = sbr.rel (0) target = $region69
    $region68: #{block_forward_pallas.1} parent=1 // pred_region
      %s1685 = ssub.s32 256, 256
      %1686 = vsyncadd [#allocation3], %s1685
      %s1687 = sshll.u32 [#allocation2], 4
      %s1688 = int_to_ptr.vmem [resolvable:$true] %s1687
      %1693 = dma.vmem_to_hbm [thread:$0]  %s1688, 256, %s16, [#allocation3], 128, 128, 8
    $region69: #{block_forward_pallas.1} parent=1 // pred_fallthru
      _
    // Predicated region
    $region70: #{block_forward_pallas.1} parent=1 // pred_check
      _
    $region71: #{block_forward_pallas.1} parent=1 // pred_check_branch
      %1695 = sbr.rel (0) target = $region73
    $region72: #{block_forward_pallas.1} parent=1 // pred_region
      %1696 = dma.done [#allocation3], 256
    $region73: #{block_forward_pallas.1} parent=1 // pred_fallthru
      _
    %1697 = vsyncpa [#allocation3], 1

</llo_original>
